<compile_context>
chip_gen: v7x
topology: tpu7x:2x2x1
jax: 0.10.0
libtpu: 0.0.40
codegen_flags: <defaults>
</compile_context>

<pallas_src>
import jax
import jax.numpy as jnp
from jax import lax
from jax.experimental import pallas as pl
from jax.experimental.pallas import tpu as pltpu

NEG_INF = -1e30  # padding bias for the lane-padded tag columns


def lstm_tagger_kernel(x_ref, wih_ref, whh_ref, b_ref, wtag_ref, btag_ref,
                       out_ref):
    """Bt sequences per grid step: LSTM (zero init state) + Linear + log_softmax.

    x_ref    : (T, Bt, H)    f32  seq-major embeddings for this batch block
    wih_ref  : (H, 4H)       f32  gate-packed input->hidden weights (W_ih.T)
    whh_ref  : (H, 4H)       f32  gate-packed hidden->hidden weights (W_hh.T)
    b_ref    : (1, 4H)       f32  combined gate bias (b_ih + b_hh)
    wtag_ref : (H, TAGP)     f32  hidden2tag weight, transposed & lane-padded
    btag_ref : (1, TAGP)     f32  hidden2tag bias, padding lanes = -1e30
    out_ref  : (T, Bt, TAGP) f32  log-softmax tag scores (padding lanes junk)
    """
    T, Bt, H = x_ref.shape
    TAGP = out_ref.shape[2]

    # Input projection for every (t, b) row in one lane-dense matmul.
    x = x_ref[...].reshape(T * Bt, H)                                   # (T*Bt, H)
    xg = (jnp.dot(x, wih_ref[...], preferred_element_type=jnp.float32)
          + b_ref[...])                                                 # (T*Bt, 4H)

    whh = whh_ref[...]                                                  # (H, 4H)

    h = jnp.zeros((Bt, H), jnp.float32)
    c = jnp.zeros((Bt, H), jnp.float32)
    hs_rows = []
    # T is static and tiny: fully unroll the serial recurrence.
    for t in range(T):
        z = (xg[t * Bt:(t + 1) * Bt, :]
             + jnp.dot(h, whh, preferred_element_type=jnp.float32))     # (Bt, 4H)
        sig = jax.nn.sigmoid(z)       # full 4H-lane EUP pass
        tnh = jnp.tanh(z)             # full 4H-lane EUP pass
        i_g = sig[:, 0:H]
        f_g = sig[:, H:2 * H]
        g_g = tnh[:, 2 * H:3 * H]
        o_g = sig[:, 3 * H:4 * H]
        c = f_g * c + i_g * g_g
        h = o_g * jnp.tanh(c)
        hs_rows.append(h)

    hs = jnp.concatenate(hs_rows, axis=0)                               # (T*Bt, H)

    # hidden2tag + log_softmax, lane-dense (TAGP is a multiple of 128).
    tag = (jnp.dot(hs, wtag_ref[...], preferred_element_type=jnp.float32)
           + btag_ref[...])                                             # (T*Bt, TAGP)
    m = jnp.max(tag, axis=1, keepdims=True)
    lse = m + jnp.log(jnp.sum(jnp.exp(tag - m), axis=1, keepdims=True))
    out_ref[...] = (tag - lse).reshape(T, Bt, TAGP)


def lstm_tagger(embeds, w_ih, w_hh, b_ih, b_hh, w_tag, b_tag):
    """embeds: (B, T, H) f32 batch of independent sentences.
    Returns (B, T, TAG) f32 log-softmax tag scores (PyTorch semantics/sequence).
    """
    B, T, H = embeds.shape
    TAG = w_tag.shape[0]
    TAGP = ((TAG + 127) // 128) * 128  # lane-dense output width

    # Bt sequences per grid block: multiple of 8, capped, and chosen so B > 8
    # yields >= 2 grid blocks (v7x has 2 TensorCores; harmless serial loop on
    # v5e/v6e). Sizes here are far below any VMEM limit on all generations.
    half = -(-B // 2)
    Bt = max(8, min(256, -(-half // 8) * 8))
    B_pad = -(-B // Bt) * Bt
    grid_b = B_pad // Bt

    # Gate-packed weights along lanes: x @ W.T == [i | f | g | o] columns.
    wih_p = w_ih.T.astype(jnp.float32)                       # (H, 4H)
    whh_p = w_hh.T.astype(jnp.float32)                       # (H, 4H)
    bias = (b_ih + b_hh).reshape(1, 4 * H).astype(jnp.float32)

    wtag_p = jnp.zeros((H, TAGP), jnp.float32).at[:, :TAG].set(w_tag.T)
    btag_p = jnp.full((1, TAGP), NEG_INF, jnp.float32).at[0, :TAG].set(b_tag)

    # Seq-major layout: per-step slab is a contiguous (Bt, H) tile in-kernel.
    x_seq = jnp.transpose(embeds, (1, 0, 2)).astype(jnp.float32)  # (T, B, H)
    if B_pad != B:
        x_seq = jnp.pad(x_seq, ((0, 0), (0, B_pad - B), (0, 0)))

    out = pl.pallas_call(
        lstm_tagger_kernel,
        out_shape=jax.ShapeDtypeStruct((T, B_pad, TAGP), jnp.float32),
        grid=(grid_b,),
        in_specs=[
            pl.BlockSpec((T, Bt, H), lambda i: (0, i, 0)),
            # Weights: full-shape blocks with constant index_map -> fetched once,
            # resident across grid steps.
            pl.BlockSpec((H, 4 * H), lambda i: (0, 0)),
            pl.BlockSpec((H, 4 * H), lambda i: (0, 0)),
            pl.BlockSpec((1, 4 * H), lambda i: (0, 0)),
            pl.BlockSpec((H, TAGP), lambda i: (0, 0)),
            pl.BlockSpec((1, TAGP), lambda i: (0, 0)),
        ],
        out_specs=pl.BlockSpec((T, Bt, TAGP), lambda i: (0, i, 0)),
        compiler_params=pltpu.CompilerParams(
            dimension_semantics=("parallel",)),
    )(x_seq, wih_p, whh_p, bias, wtag_p, btag_p)

    # (T, B_pad, TAGP) -> (B, T, TAG); the slice is the pad-lane contract.
    return jnp.transpose(out, (1, 0, 2))[:B, :, :TAG]


def _ref_lstm_tagger_single(x, w_ih, w_hh, b_ih, b_hh, w_tag, b_tag):
    """Pure-JAX f32 reference matching PyTorch nn.LSTM + Linear + log_softmax."""
    H = x.shape[1]

    def step(carry, xt):
        h, c = carry
        z = w_ih @ xt + b_ih + w_hh @ h + b_hh
        i = jax.nn.sigmoid(z[0:H])
        f = jax.nn.sigmoid(z[H:2 * H])
        g = jnp.tanh(z[2 * H:3 * H])
        o = jax.nn.sigmoid(z[3 * H:4 * H])
        c = f * c + i * g
        h = o * jnp.tanh(c)
        return (h, c), h

    (_, _), hs = lax.scan(step, (jnp.zeros(H), jnp.zeros(H)), x)
    tag = hs @ w_tag.T + b_tag
    return jax.nn.log_softmax(tag, axis=1)


if __name__ == "__main__":
    # Small shapes implied by the module: seq_len=8, hidden_dim=32, tagset=16,
    # plus a batch of 16 independent sentences (2 grid blocks of Bt=8).
    B, T, H, TAG = 16, 8, 32, 16

    key = jax.random.PRNGKey(0)
    k = jax.random.split(key, 8)

    # Deterministic PyTorch-style init: uniform(-1/sqrt(H), 1/sqrt(H))
    s = 1.0 / jnp.sqrt(jnp.float32(H))
    embeds = jax.random.normal(k[0], (B, T, H), jnp.float32)
    w_ih = jax.random.uniform(k[1], (4 * H, H), jnp.float32, -s, s)
    w_hh = jax.random.uniform(k[2], (4 * H, H), jnp.float32, -s, s)
    b_ih = jax.random.uniform(k[3], (4 * H,), jnp.float32, -s, s)
    b_hh = jax.random.uniform(k[4], (4 * H,), jnp.float32, -s, s)
    w_tag = jax.random.uniform(k[5], (TAG, H), jnp.float32, -s, s)
    b_tag = jax.random.uniform(k[6], (TAG,), jnp.float32, -s, s)

    out = lstm_tagger(embeds, w_ih, w_hh, b_ih, b_hh, w_tag, b_tag)
    out = jax.block_until_ready(out)
    assert out.shape == (B, T, TAG)

    # sanity: log_softmax rows should exponentiate-sum to 1
    row_sums = jnp.exp(out).sum(axis=-1)
    assert jnp.allclose(row_sums, 1.0, atol=1e-3), row_sums

    # correctness vs. pure-JAX f32 reference (all-f32 kernel -> tight tolerance)
    ref = jax.vmap(
        lambda x1: _ref_lstm_tagger_single(x1, w_ih, w_hh, b_ih, b_hh,
                                           w_tag, b_tag))(embeds)
    max_err = jnp.max(jnp.abs(out - ref))
    assert jnp.allclose(out, ref, atol=2e-2), max_err

    print("KERNEL_OK")
</pallas_src>

<mosaic_0001>
module attributes {stable_mosaic.version = 11 : i64} {
  func.func @lstm_tagger_kernel(%arg0: i32, %arg1: memref<8x8x32xf32, #tpu.memory_space<vmem>>, %arg2: memref<32x128xf32, #tpu.memory_space<vmem>>, %arg3: memref<32x128xf32, #tpu.memory_space<vmem>>, %arg4: memref<1x128xf32, #tpu.memory_space<vmem>>, %arg5: memref<32x128xf32, #tpu.memory_space<vmem>>, %arg6: memref<1x128xf32, #tpu.memory_space<vmem>>, %arg7: memref<8x8x128xf32, #tpu.memory_space<vmem>>) attributes {dimension_semantics = [#tpu.dimension_semantics<parallel>], iteration_bounds = array<i64: 2>, scalar_prefetch = 0 : i64, scratch_operands = 0 : i64, tpu.core_type = #tpu.core_type<tc>, window_params = [{transform_indices = @transform_0, window_bounds = array<i64: 8, 8, 32>}, {pipeline_mode = #tpu.pipeline_mode<synchronous>, transform_indices = @transform_1, window_bounds = array<i64: 32, 128>}, {pipeline_mode = #tpu.pipeline_mode<synchronous>, transform_indices = @transform_2, window_bounds = array<i64: 32, 128>}, {pipeline_mode = #tpu.pipeline_mode<synchronous>, transform_indices = @transform_3, window_bounds = array<i64: 1, 128>}, {pipeline_mode = #tpu.pipeline_mode<synchronous>, transform_indices = @transform_4, window_bounds = array<i64: 32, 128>}, {pipeline_mode = #tpu.pipeline_mode<synchronous>, transform_indices = @transform_5, window_bounds = array<i64: 1, 128>}, {transform_indices = @transform_6, window_bounds = array<i64: 8, 8, 128>}]} {
    %c0 = arith.constant 0 : index
    %c0_0 = arith.constant 0 : index
    %c0_1 = arith.constant 0 : index
    %0 = vector.load %arg1[%c0, %c0_0, %c0_1] : memref<8x8x32xf32, #tpu.memory_space<vmem>>, vector<8x8x32xf32>
    %1 = vector.shape_cast %0 : vector<8x8x32xf32> to vector<64x32xf32>
    %c0_2 = arith.constant 0 : index
    %c0_3 = arith.constant 0 : index
    %2 = vector.load %arg2[%c0_2, %c0_3] : memref<32x128xf32, #tpu.memory_space<vmem>>, vector<32x128xf32>
    %cst = arith.constant dense<0.000000e+00> : vector<64x128xf32>
    %3 = tpu.matmul %1, %2, %cst {dimension_numbers = #tpu.dot_dimension_numbers<[1], [0], [0], [1], [0, 0, 1, 1], [], []>} : vector<64x32xf32>, vector<32x128xf32>, vector<64x128xf32> -> vector<64x128xf32>
    %c0_4 = arith.constant 0 : index
    %c0_5 = arith.constant 0 : index
    %4 = vector.load %arg4[%c0_4, %c0_5] : memref<1x128xf32, #tpu.memory_space<vmem>>, vector<1x128xf32>
    %5 = vector.broadcast %4 : vector<1x128xf32> to vector<64x128xf32>
    %6 = arith.addf %3, %5 : vector<64x128xf32>
    %c0_6 = arith.constant 0 : index
    %c0_7 = arith.constant 0 : index
    %7 = vector.load %arg3[%c0_6, %c0_7] : memref<32x128xf32, #tpu.memory_space<vmem>>, vector<32x128xf32>
    %cst_8 = arith.constant 0.000000e+00 : f32
    %8 = vector.broadcast %cst_8 : f32 to vector<8x32xf32>
    %cst_9 = arith.constant 0.000000e+00 : f32
    %9 = vector.broadcast %cst_9 : f32 to vector<8x32xf32>
    %10 = vector.extract_strided_slice %6 {offsets = [0, 0], sizes = [8, 128], strides = [1, 1]} : vector<64x128xf32> to vector<8x128xf32>
    %cst_10 = arith.constant dense<0.000000e+00> : vector<8x128xf32>
    %11 = tpu.matmul %8, %7, %cst_10 {dimension_numbers = #tpu.dot_dimension_numbers<[1], [0], [0], [1], [0, 0, 1, 1], [], []>} : vector<8x32xf32>, vector<32x128xf32>, vector<8x128xf32> -> vector<8x128xf32>
    %12 = arith.addf %10, %11 : vector<8x128xf32>
    %13 = arith.negf %12 : vector<8x128xf32>
    %14 = math.exp %13 : vector<8x128xf32>
    %cst_11 = arith.constant 1.000000e+00 : f32
    %15 = vector.broadcast %cst_11 : f32 to vector<8x128xf32>
    %16 = arith.addf %15, %14 : vector<8x128xf32>
    %17 = arith.divf %15, %16 : vector<8x128xf32>
    %18 = math.tanh %12 : vector<8x128xf32>
    %19 = vector.extract_strided_slice %17 {offsets = [0, 0], sizes = [8, 32], strides = [1, 1]} : vector<8x128xf32> to vector<8x32xf32>
    %20 = vector.extract_strided_slice %17 {offsets = [0, 32], sizes = [8, 32], strides = [1, 1]} : vector<8x128xf32> to vector<8x32xf32>
    %21 = vector.extract_strided_slice %18 {offsets = [0, 64], sizes = [8, 32], strides = [1, 1]} : vector<8x128xf32> to vector<8x32xf32>
    %22 = vector.extract_strided_slice %17 {offsets = [0, 96], sizes = [8, 32], strides = [1, 1]} : vector<8x128xf32> to vector<8x32xf32>
    %23 = arith.mulf %20, %9 : vector<8x32xf32>
    %24 = arith.mulf %19, %21 : vector<8x32xf32>
    %25 = arith.addf %23, %24 : vector<8x32xf32>
    %26 = math.tanh %25 : vector<8x32xf32>
    %27 = arith.mulf %22, %26 : vector<8x32xf32>
    %28 = vector.extract_strided_slice %6 {offsets = [8, 0], sizes = [8, 128], strides = [1, 1]} : vector<64x128xf32> to vector<8x128xf32>
    %cst_12 = arith.constant dense<0.000000e+00> : vector<8x128xf32>
    %29 = tpu.matmul %27, %7, %cst_12 {dimension_numbers = #tpu.dot_dimension_numbers<[1], [0], [0], [1], [0, 0, 1, 1], [], []>} : vector<8x32xf32>, vector<32x128xf32>, vector<8x128xf32> -> vector<8x128xf32>
    %30 = arith.addf %28, %29 : vector<8x128xf32>
    %31 = arith.negf %30 : vector<8x128xf32>
    %32 = math.exp %31 : vector<8x128xf32>
    %cst_13 = arith.constant 1.000000e+00 : f32
    %33 = vector.broadcast %cst_13 : f32 to vector<8x128xf32>
    %34 = arith.addf %33, %32 : vector<8x128xf32>
    %35 = arith.divf %33, %34 : vector<8x128xf32>
    %36 = math.tanh %30 : vector<8x128xf32>
    %37 = vector.extract_strided_slice %35 {offsets = [0, 0], sizes = [8, 32], strides = [1, 1]} : vector<8x128xf32> to vector<8x32xf32>
    %38 = vector.extract_strided_slice %35 {offsets = [0, 32], sizes = [8, 32], strides = [1, 1]} : vector<8x128xf32> to vector<8x32xf32>
    %39 = vector.extract_strided_slice %36 {offsets = [0, 64], sizes = [8, 32], strides = [1, 1]} : vector<8x128xf32> to vector<8x32xf32>
    %40 = vector.extract_strided_slice %35 {offsets = [0, 96], sizes = [8, 32], strides = [1, 1]} : vector<8x128xf32> to vector<8x32xf32>
    %41 = arith.mulf %38, %25 : vector<8x32xf32>
    %42 = arith.mulf %37, %39 : vector<8x32xf32>
    %43 = arith.addf %41, %42 : vector<8x32xf32>
    %44 = math.tanh %43 : vector<8x32xf32>
    %45 = arith.mulf %40, %44 : vector<8x32xf32>
    %46 = vector.extract_strided_slice %6 {offsets = [16, 0], sizes = [8, 128], strides = [1, 1]} : vector<64x128xf32> to vector<8x128xf32>
    %cst_14 = arith.constant dense<0.000000e+00> : vector<8x128xf32>
    %47 = tpu.matmul %45, %7, %cst_14 {dimension_numbers = #tpu.dot_dimension_numbers<[1], [0], [0], [1], [0, 0, 1, 1], [], []>} : vector<8x32xf32>, vector<32x128xf32>, vector<8x128xf32> -> vector<8x128xf32>
    %48 = arith.addf %46, %47 : vector<8x128xf32>
    %49 = arith.negf %48 : vector<8x128xf32>
    %50 = math.exp %49 : vector<8x128xf32>
    %cst_15 = arith.constant 1.000000e+00 : f32
    %51 = vector.broadcast %cst_15 : f32 to vector<8x128xf32>
    %52 = arith.addf %51, %50 : vector<8x128xf32>
    %53 = arith.divf %51, %52 : vector<8x128xf32>
    %54 = math.tanh %48 : vector<8x128xf32>
    %55 = vector.extract_strided_slice %53 {offsets = [0, 0], sizes = [8, 32], strides = [1, 1]} : vector<8x128xf32> to vector<8x32xf32>
    %56 = vector.extract_strided_slice %53 {offsets = [0, 32], sizes = [8, 32], strides = [1, 1]} : vector<8x128xf32> to vector<8x32xf32>
    %57 = vector.extract_strided_slice %54 {offsets = [0, 64], sizes = [8, 32], strides = [1, 1]} : vector<8x128xf32> to vector<8x32xf32>
    %58 = vector.extract_strided_slice %53 {offsets = [0, 96], sizes = [8, 32], strides = [1, 1]} : vector<8x128xf32> to vector<8x32xf32>
    %59 = arith.mulf %56, %43 : vector<8x32xf32>
    %60 = arith.mulf %55, %57 : vector<8x32xf32>
    %61 = arith.addf %59, %60 : vector<8x32xf32>
    %62 = math.tanh %61 : vector<8x32xf32>
    %63 = arith.mulf %58, %62 : vector<8x32xf32>
    %64 = vector.extract_strided_slice %6 {offsets = [24, 0], sizes = [8, 128], strides = [1, 1]} : vector<64x128xf32> to vector<8x128xf32>
    %cst_16 = arith.constant dense<0.000000e+00> : vector<8x128xf32>
    %65 = tpu.matmul %63, %7, %cst_16 {dimension_numbers = #tpu.dot_dimension_numbers<[1], [0], [0], [1], [0, 0, 1, 1], [], []>} : vector<8x32xf32>, vector<32x128xf32>, vector<8x128xf32> -> vector<8x128xf32>
    %66 = arith.addf %64, %65 : vector<8x128xf32>
    %67 = arith.negf %66 : vector<8x128xf32>
    %68 = math.exp %67 : vector<8x128xf32>
    %cst_17 = arith.constant 1.000000e+00 : f32
    %69 = vector.broadcast %cst_17 : f32 to vector<8x128xf32>
    %70 = arith.addf %69, %68 : vector<8x128xf32>
    %71 = arith.divf %69, %70 : vector<8x128xf32>
    %72 = math.tanh %66 : vector<8x128xf32>
    %73 = vector.extract_strided_slice %71 {offsets = [0, 0], sizes = [8, 32], strides = [1, 1]} : vector<8x128xf32> to vector<8x32xf32>
    %74 = vector.extract_strided_slice %71 {offsets = [0, 32], sizes = [8, 32], strides = [1, 1]} : vector<8x128xf32> to vector<8x32xf32>
    %75 = vector.extract_strided_slice %72 {offsets = [0, 64], sizes = [8, 32], strides = [1, 1]} : vector<8x128xf32> to vector<8x32xf32>
    %76 = vector.extract_strided_slice %71 {offsets = [0, 96], sizes = [8, 32], strides = [1, 1]} : vector<8x128xf32> to vector<8x32xf32>
    %77 = arith.mulf %74, %61 : vector<8x32xf32>
    %78 = arith.mulf %73, %75 : vector<8x32xf32>
    %79 = arith.addf %77, %78 : vector<8x32xf32>
    %80 = math.tanh %79 : vector<8x32xf32>
    %81 = arith.mulf %76, %80 : vector<8x32xf32>
    %82 = vector.extract_strided_slice %6 {offsets = [32, 0], sizes = [8, 128], strides = [1, 1]} : vector<64x128xf32> to vector<8x128xf32>
    %cst_18 = arith.constant dense<0.000000e+00> : vector<8x128xf32>
    %83 = tpu.matmul %81, %7, %cst_18 {dimension_numbers = #tpu.dot_dimension_numbers<[1], [0], [0], [1], [0, 0, 1, 1], [], []>} : vector<8x32xf32>, vector<32x128xf32>, vector<8x128xf32> -> vector<8x128xf32>
    %84 = arith.addf %82, %83 : vector<8x128xf32>
    %85 = arith.negf %84 : vector<8x128xf32>
    %86 = math.exp %85 : vector<8x128xf32>
    %cst_19 = arith.constant 1.000000e+00 : f32
    %87 = vector.broadcast %cst_19 : f32 to vector<8x128xf32>
    %88 = arith.addf %87, %86 : vector<8x128xf32>
    %89 = arith.divf %87, %88 : vector<8x128xf32>
    %90 = math.tanh %84 : vector<8x128xf32>
    %91 = vector.extract_strided_slice %89 {offsets = [0, 0], sizes = [8, 32], strides = [1, 1]} : vector<8x128xf32> to vector<8x32xf32>
    %92 = vector.extract_strided_slice %89 {offsets = [0, 32], sizes = [8, 32], strides = [1, 1]} : vector<8x128xf32> to vector<8x32xf32>
    %93 = vector.extract_strided_slice %90 {offsets = [0, 64], sizes = [8, 32], strides = [1, 1]} : vector<8x128xf32> to vector<8x32xf32>
    %94 = vector.extract_strided_slice %89 {offsets = [0, 96], sizes = [8, 32], strides = [1, 1]} : vector<8x128xf32> to vector<8x32xf32>
    %95 = arith.mulf %92, %79 : vector<8x32xf32>
    %96 = arith.mulf %91, %93 : vector<8x32xf32>
    %97 = arith.addf %95, %96 : vector<8x32xf32>
    %98 = math.tanh %97 : vector<8x32xf32>
    %99 = arith.mulf %94, %98 : vector<8x32xf32>
    %100 = vector.extract_strided_slice %6 {offsets = [40, 0], sizes = [8, 128], strides = [1, 1]} : vector<64x128xf32> to vector<8x128xf32>
    %cst_20 = arith.constant dense<0.000000e+00> : vector<8x128xf32>
    %101 = tpu.matmul %99, %7, %cst_20 {dimension_numbers = #tpu.dot_dimension_numbers<[1], [0], [0], [1], [0, 0, 1, 1], [], []>} : vector<8x32xf32>, vector<32x128xf32>, vector<8x128xf32> -> vector<8x128xf32>
    %102 = arith.addf %100, %101 : vector<8x128xf32>
    %103 = arith.negf %102 : vector<8x128xf32>
    %104 = math.exp %103 : vector<8x128xf32>
    %cst_21 = arith.constant 1.000000e+00 : f32
    %105 = vector.broadcast %cst_21 : f32 to vector<8x128xf32>
    %106 = arith.addf %105, %104 : vector<8x128xf32>
    %107 = arith.divf %105, %106 : vector<8x128xf32>
    %108 = math.tanh %102 : vector<8x128xf32>
    %109 = vector.extract_strided_slice %107 {offsets = [0, 0], sizes = [8, 32], strides = [1, 1]} : vector<8x128xf32> to vector<8x32xf32>
    %110 = vector.extract_strided_slice %107 {offsets = [0, 32], sizes = [8, 32], strides = [1, 1]} : vector<8x128xf32> to vector<8x32xf32>
    %111 = vector.extract_strided_slice %108 {offsets = [0, 64], sizes = [8, 32], strides = [1, 1]} : vector<8x128xf32> to vector<8x32xf32>
    %112 = vector.extract_strided_slice %107 {offsets = [0, 96], sizes = [8, 32], strides = [1, 1]} : vector<8x128xf32> to vector<8x32xf32>
    %113 = arith.mulf %110, %97 : vector<8x32xf32>
    %114 = arith.mulf %109, %111 : vector<8x32xf32>
    %115 = arith.addf %113, %114 : vector<8x32xf32>
    %116 = math.tanh %115 : vector<8x32xf32>
    %117 = arith.mulf %112, %116 : vector<8x32xf32>
    %118 = vector.extract_strided_slice %6 {offsets = [48, 0], sizes = [8, 128], strides = [1, 1]} : vector<64x128xf32> to vector<8x128xf32>
    %cst_22 = arith.constant dense<0.000000e+00> : vector<8x128xf32>
    %119 = tpu.matmul %117, %7, %cst_22 {dimension_numbers = #tpu.dot_dimension_numbers<[1], [0], [0], [1], [0, 0, 1, 1], [], []>} : vector<8x32xf32>, vector<32x128xf32>, vector<8x128xf32> -> vector<8x128xf32>
    %120 = arith.addf %118, %119 : vector<8x128xf32>
    %121 = arith.negf %120 : vector<8x128xf32>
    %122 = math.exp %121 : vector<8x128xf32>
    %cst_23 = arith.constant 1.000000e+00 : f32
    %123 = vector.broadcast %cst_23 : f32 to vector<8x128xf32>
    %124 = arith.addf %123, %122 : vector<8x128xf32>
    %125 = arith.divf %123, %124 : vector<8x128xf32>
    %126 = math.tanh %120 : vector<8x128xf32>
    %127 = vector.extract_strided_slice %125 {offsets = [0, 0], sizes = [8, 32], strides = [1, 1]} : vector<8x128xf32> to vector<8x32xf32>
    %128 = vector.extract_strided_slice %125 {offsets = [0, 32], sizes = [8, 32], strides = [1, 1]} : vector<8x128xf32> to vector<8x32xf32>
    %129 = vector.extract_strided_slice %126 {offsets = [0, 64], sizes = [8, 32], strides = [1, 1]} : vector<8x128xf32> to vector<8x32xf32>
    %130 = vector.extract_strided_slice %125 {offsets = [0, 96], sizes = [8, 32], strides = [1, 1]} : vector<8x128xf32> to vector<8x32xf32>
    %131 = arith.mulf %128, %115 : vector<8x32xf32>
    %132 = arith.mulf %127, %129 : vector<8x32xf32>
    %133 = arith.addf %131, %132 : vector<8x32xf32>
    %134 = math.tanh %133 : vector<8x32xf32>
    %135 = arith.mulf %130, %134 : vector<8x32xf32>
    %136 = vector.extract_strided_slice %6 {offsets = [56, 0], sizes = [8, 128], strides = [1, 1]} : vector<64x128xf32> to vector<8x128xf32>
    %cst_24 = arith.constant dense<0.000000e+00> : vector<8x128xf32>
    %137 = tpu.matmul %135, %7, %cst_24 {dimension_numbers = #tpu.dot_dimension_numbers<[1], [0], [0], [1], [0, 0, 1, 1], [], []>} : vector<8x32xf32>, vector<32x128xf32>, vector<8x128xf32> -> vector<8x128xf32>
    %138 = arith.addf %136, %137 : vector<8x128xf32>
    %139 = arith.negf %138 : vector<8x128xf32>
    %140 = math.exp %139 : vector<8x128xf32>
    %cst_25 = arith.constant 1.000000e+00 : f32
    %141 = vector.broadcast %cst_25 : f32 to vector<8x128xf32>
    %142 = arith.addf %141, %140 : vector<8x128xf32>
    %143 = arith.divf %141, %142 : vector<8x128xf32>
    %144 = math.tanh %138 : vector<8x128xf32>
    %145 = vector.extract_strided_slice %143 {offsets = [0, 0], sizes = [8, 32], strides = [1, 1]} : vector<8x128xf32> to vector<8x32xf32>
    %146 = vector.extract_strided_slice %143 {offsets = [0, 32], sizes = [8, 32], strides = [1, 1]} : vector<8x128xf32> to vector<8x32xf32>
    %147 = vector.extract_strided_slice %144 {offsets = [0, 64], sizes = [8, 32], strides = [1, 1]} : vector<8x128xf32> to vector<8x32xf32>
    %148 = vector.extract_strided_slice %143 {offsets = [0, 96], sizes = [8, 32], strides = [1, 1]} : vector<8x128xf32> to vector<8x32xf32>
    %149 = arith.mulf %146, %133 : vector<8x32xf32>
    %150 = arith.mulf %145, %147 : vector<8x32xf32>
    %151 = arith.addf %149, %150 : vector<8x32xf32>
    %152 = math.tanh %151 : vector<8x32xf32>
    %153 = arith.mulf %148, %152 : vector<8x32xf32>
    %154 = tpu.concatenate %27, %45, %63, %81, %99, %117, %135, %153 in 0 : vector<8x32xf32>, vector<8x32xf32>, vector<8x32xf32>, vector<8x32xf32>, vector<8x32xf32>, vector<8x32xf32>, vector<8x32xf32>, vector<8x32xf32> -> vector<64x32xf32>
    %c0_26 = arith.constant 0 : index
    %c0_27 = arith.constant 0 : index
    %155 = vector.load %arg5[%c0_26, %c0_27] : memref<32x128xf32, #tpu.memory_space<vmem>>, vector<32x128xf32>
    %cst_28 = arith.constant dense<0.000000e+00> : vector<64x128xf32>
    %156 = tpu.matmul %154, %155, %cst_28 {dimension_numbers = #tpu.dot_dimension_numbers<[1], [0], [0], [1], [0, 0, 1, 1], [], []>} : vector<64x32xf32>, vector<32x128xf32>, vector<64x128xf32> -> vector<64x128xf32>
    %c0_29 = arith.constant 0 : index
    %c0_30 = arith.constant 0 : index
    %157 = vector.load %arg6[%c0_29, %c0_30] : memref<1x128xf32, #tpu.memory_space<vmem>>, vector<1x128xf32>
    %158 = vector.broadcast %157 : vector<1x128xf32> to vector<64x128xf32>
    %159 = arith.addf %156, %158 : vector<64x128xf32>
    %cst_31 = arith.constant dense<0xFF800000> : vector<64xf32>
    %160 = vector.multi_reduction <maximumf>, %159, %cst_31 [1] : vector<64x128xf32> to vector<64xf32>
    %161 = vector.shape_cast %160 : vector<64xf32> to vector<64x1xf32>
    %162 = vector.broadcast %161 : vector<64x1xf32> to vector<64x128xf32>
    %163 = arith.subf %159, %162 : vector<64x128xf32>
    %164 = math.exp %163 : vector<64x128xf32>
    %cst_32 = arith.constant dense<0.000000e+00> : vector<64xf32>
    %165 = vector.multi_reduction <add>, %164, %cst_32 [1] : vector<64x128xf32> to vector<64xf32>
    %166 = vector.shape_cast %165 : vector<64xf32> to vector<64x1xf32>
    %167 = math.log %166 : vector<64x1xf32>
    %168 = arith.addf %161, %167 : vector<64x1xf32>
    %169 = vector.broadcast %168 : vector<64x1xf32> to vector<64x128xf32>
    %170 = arith.subf %159, %169 : vector<64x128xf32>
    %171 = vector.shape_cast %170 : vector<64x128xf32> to vector<8x8x128xf32>
    %c0_33 = arith.constant 0 : index
    %c0_34 = arith.constant 0 : index
    %c0_35 = arith.constant 0 : index
    %172 = vector.load %arg7[%c0_33, %c0_34, %c0_35] : memref<8x8x128xf32, #tpu.memory_space<vmem>>, vector<8x8x128xf32>
    tpu.vector_store %arg7[%c0_33, %c0_34, %c0_35], %171 {strides = array<i32>} : memref<8x8x128xf32, #tpu.memory_space<vmem>>, vector<8x8x128xf32>,
    return
  }
  func.func @transform_0(%arg0: i32) -> (i32, i32, i32) {
    %c0_i32 = arith.constant 0 : i32
    %c0_i32_0 = arith.constant 0 : i32
    %c0_i32_1 = arith.constant 0 : i32
    return %c0_i32, %arg0, %c0_i32_0 : i32, i32, i32
  }
  func.func @transform_1(%arg0: i32) -> (i32, i32) {
    %c0_i32 = arith.constant 0 : i32
    %c0_i32_0 = arith.constant 0 : i32
    %c0_i32_1 = arith.constant 0 : i32
    return %c0_i32, %c0_i32_0 : i32, i32
  }
  func.func @transform_2(%arg0: i32) -> (i32, i32) {
    %c0_i32 = arith.constant 0 : i32
    %c0_i32_0 = arith.constant 0 : i32
    %c0_i32_1 = arith.constant 0 : i32
    return %c0_i32, %c0_i32_0 : i32, i32
  }
  func.func @transform_3(%arg0: i32) -> (i32, i32) {
    %c0_i32 = arith.constant 0 : i32
    %c0_i32_0 = arith.constant 0 : i32
    %c0_i32_1 = arith.constant 0 : i32
    return %c0_i32, %c0_i32_0 : i32, i32
  }
  func.func @transform_4(%arg0: i32) -> (i32, i32) {
    %c0_i32 = arith.constant 0 : i32
    %c0_i32_0 = arith.constant 0 : i32
    %c0_i32_1 = arith.constant 0 : i32
    return %c0_i32, %c0_i32_0 : i32, i32
  }
  func.func @transform_5(%arg0: i32) -> (i32, i32) {
    %c0_i32 = arith.constant 0 : i32
    %c0_i32_0 = arith.constant 0 : i32
    %c0_i32_1 = arith.constant 0 : i32
    return %c0_i32, %c0_i32_0 : i32, i32
  }
  func.func @transform_6(%arg0: i32) -> (i32, i32, i32) {
    %c0_i32 = arith.constant 0 : i32
    %c0_i32_0 = arith.constant 0 : i32
    %c0_i32_1 = arith.constant 0 : i32
    return %c0_i32, %arg0, %c0_i32_0 : i32, i32, i32
  }
}

</mosaic_0001>

<llo_original>
// kernel: tpu_custom_call.1
$region0: #{tpu_custom_call.1}
  #allocation0 [shape = 'u32[]', space=smem, size = 0x4, offset = 0x4, fixed_abs, tag = 'smem constant byte address 0x4 - core index']
  #allocation1 [shape = 'u32[144,128]{1,0:T(1,128)}', space=vmem, size = 0x12000, scoped, tag = 'internal scratch']
  %s0 = inlined_call_operand.hbm [shape: f32[8,16,32], index: 0, kind: input, shape index: {}]
  %s1 = inlined_call_operand.hbm [shape: f32[32,128], index: 1, kind: input, shape index: {}]
  %s2 = inlined_call_operand.hbm [shape: f32[32,128], index: 2, kind: input, shape index: {}]
  %s3 = inlined_call_operand.vmem [shape: f32[1,128], index: 3, kind: input, shape index: {}]
  %s4 = inlined_call_operand.hbm [shape: f32[32,128], index: 4, kind: input, shape index: {}]
  %s5 = inlined_call_operand.vmem [shape: f32[1,128], index: 5, kind: input, shape index: {}]
  %s6 = inlined_call_operand.hbm [shape: f32[8,16,128], index: 6, kind: output, shape index: {}]
  %s7 = sld [smem:[#allocation0]]
  $region73: #{tpu_custom_call.1} parent=0
    _
  %s9 = ssub.s32 1, %s7
  %s10 = scalar_select 0, %s9, %s7
  $region1: #{tpu_custom_call.1} parent=0
    #allocation2 [shape = 'u8[65536]{0}', space=vmem, size = 0x10000, scoped, tag = 'input window, operand 0']
    #allocation3 [shape = 's32[2]{0}', space=sflag, size = 0x8, scoped, tag = 'scoped memory for tpu_custom_call.1']
    #allocation4 [shape = 's32[2]{0}', space=sflag, size = 0x8, scoped, tag = 'scoped memory for tpu_custom_call.1']
    #allocation5 [shape = 'u8[16384]{0}', space=vmem, size = 0x4000, scoped, tag = 'input window, operand 1, single buffered']
    #allocation6 [shape = 's32[1]{0}', space=sflag, size = 0x4, scoped, tag = 'scoped memory for tpu_custom_call.1']
    #allocation7 [shape = 'u8[16384]{0}', space=vmem, size = 0x4000, scoped, tag = 'input window, operand 2, single buffered']
    #allocation8 [shape = 'u8[16384]{0}', space=vmem, size = 0x4000, scoped, tag = 'input window, operand 4, single buffered']
    #allocation9 [shape = 's32[1]{0}', space=sflag, size = 0x4, scoped, tag = 'scoped memory for tpu_custom_call.1']
    #allocation10 [shape = 'u8[65536]{0}', space=vmem, size = 0x10000, scoped, tag = 'output window, operand 0']
    %11 = vsyncpa [#allocation3], 0
    %s12 = scalar_lea.sflag [#allocation3], 1
    %13 = vsyncpa %s12, 0
    %14 = vsyncpa [#allocation6], 0
    %15 = vsyncpa [#allocation9], 0
    %16 = vsyncpa [#allocation4], 0
    %s17 = scalar_lea.sflag [#allocation4], 1
    %18 = vsyncpa %s17, 0
    loop: start=0, step=1, limit=4
    $region2: #{tpu_custom_call.1} parent=1 // loop_pre_header
      _
    $region3: #{tpu_custom_call.1} parent=1 // loop_header
      %s20 = sphi 0, %s24
      %p21 = scmp.ge.s32.totalorder %s20, 4
      %s30 = sphi 0, %s32
      %s33 = sphi 0, %s30
      %s34 = sphi 0, %s33
      %s50 = sphi 0, %s34
      %s54 = sphi 0, %s54
      %s56 = sphi 0, %s54
      %s57 = sphi 0, %s56
      %s71 = sphi 0, %s57
      %s75 = sphi 0, %s75
      %s77 = sphi 0, %s75
      %s78 = sphi 0, %s77
      %s92 = sphi 0, %s78
      %s96 = sphi 0, %s96
      %s98 = sphi 0, %s96
      %s99 = sphi 0, %s98
      %s113 = sphi 0, %s99
      %s117 = sphi 0, %s117
      %s119 = sphi 0, %s117
      %s120 = sphi 0, %s119
      %s134 = sphi 0, %s120
      %s138 = sphi 0, %s138
      %s140 = sphi 0, %s138
      %s141 = sphi 0, %s140
      %s155 = sphi 0, %s141
      %s161 = sphi 0, %s163
      %s164 = sphi 0, %s161
      %s165 = sphi 0, %s164
      %s181 = sphi 0, %s165
    $region4: #{tpu_custom_call.1} parent=1 // loop_header_branch
      %23 = sbr.rel (%p21) target = $region8
    $region5: #{tpu_custom_call.1} parent=1 // loop_body
      %s25 = ssub.s32 %s20, 1
      %s26 = ssub.s32 %s20, 2
      %s27 = sadd.s32 %s20, 1
      %s28 = ssub.s32 %s20, %s27
      %p29 = scmp.eq.s32.totalorder %s28, 0
      %s31 = sadd.s32 %s30, 1
      %s32 = scalar_select %p29, %s30, %s31
      %p35 = pneg %p29
      %p36 = scmp.eq.s32.totalorder %s20, 1
      %p37 = por %p35, %p36
      %p38 = scmp.ne.s32.totalorder %s30, %s33
      %p39 = scmp.eq.s32.totalorder %s20, 0
      %p40 = por %p38, %p39
      %p41 = scmp.ne.s32.totalorder %s30, %s33
      %p42 = scmp.eq.s32.totalorder %s25, 1
      %p43 = por %p41, %p42
      %p44 = scmp.ne.s32.totalorder %s33, %s34
      %p45 = scmp.eq.s32.totalorder %s25, 0
      %p46 = por %p44, %p45
      %p47 = scmp.ne.s32.totalorder %s33, %s34
      %p48 = scmp.eq.s32.totalorder %s26, 1
      %p49 = por %p47, %p48
      %p51 = scmp.ne.s32.totalorder %s34, %s50
      %p52 = scmp.eq.s32.totalorder %s26, 0
      %p53 = por %p51, %p52
      %s55 = sadd.s32 %s54, 1
      %p58 = scmp.eq.s32.totalorder %s20, 1
      %p59 = scmp.ne.s32.totalorder %s54, %s56
      %p60 = scmp.eq.s32.totalorder %s20, 0
      %p61 = por %p59, %p60
      %p62 = scmp.ne.s32.totalorder %s54, %s56
      %p63 = scmp.eq.s32.totalorder %s25, 1
      %p64 = por %p62, %p63
      %p65 = scmp.ne.s32.totalorder %s56, %s57
      %p66 = scmp.eq.s32.totalorder %s25, 0
      %p67 = por %p65, %p66
      %p68 = scmp.ne.s32.totalorder %s56, %s57
      %p69 = scmp.eq.s32.totalorder %s26, 1
      %p70 = por %p68, %p69
      %p72 = scmp.ne.s32.totalorder %s57, %s71
      %p73 = scmp.eq.s32.totalorder %s26, 0
      %p74 = por %p72, %p73
      %s76 = sadd.s32 %s75, 1
      %p79 = scmp.eq.s32.totalorder %s20, 1
      %p80 = scmp.ne.s32.totalorder %s75, %s77
      %p81 = scmp.eq.s32.totalorder %s20, 0
      %p82 = por %p80, %p81
      %p83 = scmp.ne.s32.totalorder %s75, %s77
      %p84 = scmp.eq.s32.totalorder %s25, 1
      %p85 = por %p83, %p84
      %p86 = scmp.ne.s32.totalorder %s77, %s78
      %p87 = scmp.eq.s32.totalorder %s25, 0
      %p88 = por %p86, %p87
      %p89 = scmp.ne.s32.totalorder %s77, %s78
      %p90 = scmp.eq.s32.totalorder %s26, 1
      %p91 = por %p89, %p90
      %p93 = scmp.ne.s32.totalorder %s78, %s92
      %p94 = scmp.eq.s32.totalorder %s26, 0
      %p95 = por %p93, %p94
      %s97 = sadd.s32 %s96, 1
      %p100 = scmp.eq.s32.totalorder %s20, 1
      %p101 = scmp.ne.s32.totalorder %s96, %s98
      %p102 = scmp.eq.s32.totalorder %s20, 0
      %p103 = por %p101, %p102
      %p104 = scmp.ne.s32.totalorder %s96, %s98
      %p105 = scmp.eq.s32.totalorder %s25, 1
      %p106 = por %p104, %p105
      %p107 = scmp.ne.s32.totalorder %s98, %s99
      %p108 = scmp.eq.s32.totalorder %s25, 0
      %p109 = por %p107, %p108
      %p110 = scmp.ne.s32.totalorder %s98, %s99
      %p111 = scmp.eq.s32.totalorder %s26, 1
      %p112 = por %p110, %p111
      %p114 = scmp.ne.s32.totalorder %s99, %s113
      %p115 = scmp.eq.s32.totalorder %s26, 0
      %p116 = por %p114, %p115
      %s118 = sadd.s32 %s117, 1
      %p121 = scmp.eq.s32.totalorder %s20, 1
      %p122 = scmp.ne.s32.totalorder %s117, %s119
      %p123 = scmp.eq.s32.totalorder %s20, 0
      %p124 = por %p122, %p123
      %p125 = scmp.ne.s32.totalorder %s117, %s119
      %p126 = scmp.eq.s32.totalorder %s25, 1
      %p127 = por %p125, %p126
      %p128 = scmp.ne.s32.totalorder %s119, %s120
      %p129 = scmp.eq.s32.totalorder %s25, 0
      %p130 = por %p128, %p129
      %p131 = scmp.ne.s32.totalorder %s119, %s120
      %p132 = scmp.eq.s32.totalorder %s26, 1
      %p133 = por %p131, %p132
      %p135 = scmp.ne.s32.totalorder %s120, %s134
      %p136 = scmp.eq.s32.totalorder %s26, 0
      %p137 = por %p135, %p136
      %s139 = sadd.s32 %s138, 1
      %p142 = scmp.eq.s32.totalorder %s20, 1
      %p143 = scmp.ne.s32.totalorder %s138, %s140
      %p144 = scmp.eq.s32.totalorder %s20, 0
      %p145 = por %p143, %p144
      %p146 = scmp.ne.s32.totalorder %s138, %s140
      %p147 = scmp.eq.s32.totalorder %s25, 1
      %p148 = por %p146, %p147
      %p149 = scmp.ne.s32.totalorder %s140, %s141
      %p150 = scmp.eq.s32.totalorder %s25, 0
      %p151 = por %p149, %p150
      %p152 = scmp.ne.s32.totalorder %s140, %s141
      %p153 = scmp.eq.s32.totalorder %s26, 1
      %p154 = por %p152, %p153
      %p156 = scmp.ne.s32.totalorder %s141, %s155
      %p157 = scmp.eq.s32.totalorder %s26, 0
      %p158 = por %p156, %p157
      %s159 = ssub.s32 %s20, %s27
      %p160 = scmp.eq.s32.totalorder %s159, 0
      %s162 = sadd.s32 %s161, 1
      %s163 = scalar_select %p160, %s161, %s162
      %p166 = pneg %p160
      %p167 = scmp.eq.s32.totalorder %s20, 1
      %p168 = por %p166, %p167
      %p169 = scmp.ne.s32.totalorder %s161, %s164
      %p170 = scmp.eq.s32.totalorder %s20, 0
      %p171 = por %p169, %p170
      %p172 = scmp.ne.s32.totalorder %s161, %s164
      %p173 = scmp.eq.s32.totalorder %s25, 1
      %p174 = por %p172, %p173
      %p175 = scmp.ne.s32.totalorder %s164, %s165
      %p176 = scmp.eq.s32.totalorder %s25, 0
      %p177 = por %p175, %p176
      %p178 = scmp.ne.s32.totalorder %s164, %s165
      %p179 = scmp.eq.s32.totalorder %s26, 1
      %p180 = por %p178, %p179
      %p182 = scmp.ne.s32.totalorder %s165, %s181
      %p183 = scmp.eq.s32.totalorder %s26, 0
      %p184 = por %p182, %p183
      %p185 = scmp.le.s32.totalorder 1, %s20
      %p186 = scmp.lt.s32.totalorder %s20, 3
      %p187 = pnand %p185, %p186
      %p188 = pneg %p187
      // Predicated region
      $region9: #{tpu_custom_call.1} parent=5 // pred_check
        _
      $region10: #{tpu_custom_call.1} parent=5 // pred_check_branch
        %190 = sbr.rel (%p187) target = $region12
      $region11: #{tpu_custom_call.1} parent=5 // pred_region
        %s191 = ssub.s32 %s20, 1
        // Predicated region
        $region13: #{tpu_custom_call.1} parent=11 // pred_check
          %p192 = pneg %p67
        $region14: #{tpu_custom_call.1} parent=11 // pred_check_branch
          %194 = sbr.rel (%p192) target = $region16
        $region15: #{tpu_custom_call.1} parent=11 // pred_region
          %s196 = ssub.s32 512, 512
          %197 = vsyncadd [#allocation6], %s196
          %s198 = sshll.u32 [#allocation5], 4
          %s199 = int_to_ptr.vmem [resolvable:$true] %s198
          %204 = dma.hbm_to_vmem [thread:$0]  %s1, 512, %s199, [#allocation6], 128, 128, 8
        $region16: #{tpu_custom_call.1} parent=11 // pred_fallthru
          _
        // Predicated region
        $region17: #{tpu_custom_call.1} parent=11 // pred_check
          %p205 = pneg %p88
        $region18: #{tpu_custom_call.1} parent=11 // pred_check_branch
          %207 = sbr.rel (%p205) target = $region20
        $region19: #{tpu_custom_call.1} parent=11 // pred_region
          %s209 = ssub.s32 512, 512
          %210 = vsyncadd [#allocation6], %s209
          %s211 = sshll.u32 [#allocation7], 4
          %s212 = int_to_ptr.vmem [resolvable:$true] %s211
          %217 = dma.hbm_to_vmem [thread:$0]  %s2, 512, %s212, [#allocation6], 128, 128, 8
        $region20: #{tpu_custom_call.1} parent=11 // pred_fallthru
          _
        // Predicated region
        $region21: #{tpu_custom_call.1} parent=11 // pred_check
          %p218 = pneg %p109
        $region22: #{tpu_custom_call.1} parent=11 // pred_check_branch
          %220 = sbr.rel (%p218) target = $region24
        $region23: #{tpu_custom_call.1} parent=11 // pred_region
          _
        $region24: #{tpu_custom_call.1} parent=11 // pred_fallthru
          _
        // Predicated region
        $region25: #{tpu_custom_call.1} parent=11 // pred_check
          %p221 = pneg %p130
        $region26: #{tpu_custom_call.1} parent=11 // pred_check_branch
          %223 = sbr.rel (%p221) target = $region28
        $region27: #{tpu_custom_call.1} parent=11 // pred_region
          %s225 = ssub.s32 512, 512
          %226 = vsyncadd [#allocation9], %s225
          %s227 = sshll.u32 [#allocation8], 4
          %s228 = int_to_ptr.vmem [resolvable:$true] %s227
          %233 = dma.hbm_to_vmem [thread:$0]  %s4, 512, %s228, [#allocation9], 128, 128, 8
        $region28: #{tpu_custom_call.1} parent=11 // pred_fallthru
          _
        // Predicated region
        $region29: #{tpu_custom_call.1} parent=11 // pred_check
          %p234 = pneg %p151
        $region30: #{tpu_custom_call.1} parent=11 // pred_check_branch
          %236 = sbr.rel (%p234) target = $region32
        $region31: #{tpu_custom_call.1} parent=11 // pred_region
          _
        $region32: #{tpu_custom_call.1} parent=11 // pred_fallthru
          _
      $region12: #{tpu_custom_call.1} parent=5 // pred_fallthru
        _
      %p237 = scmp.lt.s32.totalorder %s20, 2
      // Predicated region
      $region33: #{tpu_custom_call.1} parent=5 // pred_check
        %p238 = pneg %p237
      $region34: #{tpu_custom_call.1} parent=5 // pred_check_branch
        %240 = sbr.rel (%p238) target = $region36
      $region35: #{tpu_custom_call.1} parent=5 // pred_region
        // Predicated region
        $region37: #{tpu_custom_call.1} parent=35 // pred_check
          %p241 = pneg %p40
        $region38: #{tpu_custom_call.1} parent=35 // pred_check_branch
          %243 = sbr.rel (%p241) target = $region40
        $region39: #{tpu_custom_call.1} parent=35 // pred_region
          %s244 = sand.u32 %s30, 1
          %s245 = scalar_lea.sflag [#allocation3], %s244
          %s246 = sand.u32 %s30, 1
          %s247 = smul.addr %s246, 64
          %s248 = scalar_lea.vmem [#allocation2], %s247
          %s250 = ssub.s32 1024, 1024
          %251 = vsyncadd %s245, %s250
          %s252 = smul.addr %s20, 128
          %s253 = scalar_lea.hbm %s0, %s252
          %s254 = sshll.u32 %s248, 4
          %s255 = int_to_ptr.vmem [resolvable:$true] %s254
          %260 = dma.hbm_to_vmem [thread:$0]  %s253, 1024, %s255, %s245, 256, 128, 8
        $region40: #{tpu_custom_call.1} parent=35 // pred_fallthru
          _
      $region36: #{tpu_custom_call.1} parent=5 // pred_fallthru
        _
      %p261 = scmp.le.s32.totalorder 1, %s20
      %p262 = scmp.lt.s32.totalorder %s20, 3
      %p263 = pnand %p261, %p262
      %p264 = pneg %p263
      // Predicated region
      $region41: #{tpu_custom_call.1} parent=5 // pred_check
        _
      $region42: #{tpu_custom_call.1} parent=5 // pred_check_branch
        %266 = sbr.rel (%p263) target = $region44
      $region43: #{tpu_custom_call.1} parent=5 // pred_region
        %s267 = ssub.s32 %s20, 1
        %s268 = sand.u32 %s33, 1
        %s269 = scalar_lea.sflag [#allocation3], %s268
        %s270 = sand.u32 %s33, 1
        %s271 = smul.addr %s270, 64
        %s272 = scalar_lea.vmem [#allocation2], %s271
        // Predicated region
        $region45: #{tpu_custom_call.1} parent=43 // pred_check
          %p273 = pneg %p46
        $region46: #{tpu_custom_call.1} parent=43 // pred_check_branch
          %275 = sbr.rel (%p273) target = $region48
        $region47: #{tpu_custom_call.1} parent=43 // pred_region
          %276 = dma.done %s269, 1024
        $region48: #{tpu_custom_call.1} parent=43 // pred_fallthru
          _
        // Predicated region
        $region49: #{tpu_custom_call.1} parent=43 // pred_check
          %p277 = pneg %p67
        $region50: #{tpu_custom_call.1} parent=43 // pred_check_branch
          %279 = sbr.rel (%p277) target = $region52
        $region51: #{tpu_custom_call.1} parent=43 // pred_region
          %280 = dma.done [#allocation6], 512
        $region52: #{tpu_custom_call.1} parent=43 // pred_fallthru
          _
        // Predicated region
        $region53: #{tpu_custom_call.1} parent=43 // pred_check
          %p281 = pneg %p88
        $region54: #{tpu_custom_call.1} parent=43 // pred_check_branch
          %283 = sbr.rel (%p281) target = $region56
        $region55: #{tpu_custom_call.1} parent=43 // pred_region
          %284 = dma.done [#allocation6], 512
        $region56: #{tpu_custom_call.1} parent=43 // pred_fallthru
          _
        // Predicated region
        $region57: #{tpu_custom_call.1} parent=43 // pred_check
          %p285 = pneg %p130
        $region58: #{tpu_custom_call.1} parent=43 // pred_check_branch
          %287 = sbr.rel (%p285) target = $region60
        $region59: #{tpu_custom_call.1} parent=43 // pred_region
          %288 = dma.done [#allocation9], 512
        $region60: #{tpu_custom_call.1} parent=43 // pred_fallthru
          _
        %s289 = sand.u32 %s33, 1
        %s290 = scalar_lea.sflag [#allocation3], %s289
        %s291 = sand.u32 %s33, 1
        %s292 = smul.addr %s291, 64
        %s293 = scalar_lea.vmem [#allocation2], %s292
        %p294 = pneg %p46
        %p295 = pneg %p43
        %p296 = pneg %p67
        %p297 = pneg %p64
        %p298 = pneg %p88
        %p299 = pneg %p85
        %p300 = pneg %p109
        %p301 = pneg %p106
        %p302 = pneg %p130
        %p303 = pneg %p127
        %p304 = pneg %p151
        %p305 = pneg %p148
        %p306 = pneg %p177
        %p307 = pneg %p174
        %s308 = sand.u32 %s164, 1
        %s309 = scalar_lea.sflag [#allocation4], %s308
        %s310 = sand.u32 %s164, 1
        %s311 = smul.addr %s310, 64
        %s312 = scalar_lea.vmem [#allocation10], %s311
        %v313 = vld [vmem:[%s272] sm:$0xff]
        %v314 = vld [vmem:[%s272 + $0x8] sm:$0xff]
        %v315 = vld [vmem:[%s272 + $0x10] sm:$0xff]
        %v316 = vld [vmem:[%s272 + $0x18] sm:$0xff]
        %v317 = vld [vmem:[%s272 + $0x20] sm:$0xff]
        %v318 = vld [vmem:[%s272 + $0x28] sm:$0xff]
        %v319 = vld [vmem:[%s272 + $0x30] sm:$0xff]
        %v320 = vld [vmem:[%s272 + $0x38] sm:$0xff]
        %v321 = vld [vmem:[#allocation5] sm:$0xff]
        %v322 = vld [vmem:[#allocation5 + $0x8] sm:$0xff]
        %v323 = vld [vmem:[#allocation5 + $0x10] sm:$0xff]
        %v324 = vld [vmem:[#allocation5 + $0x18] sm:$0xff]
        %v325 = vld [vmem:[%s3] sm:$0x1]
        %v327 = vlaneseq
        %v328 = vshrl.u32 %v327, 7
        %v329 = vsub.s32 0, %v328
        %v330 = vrot.slane %v325, %v329
        %vm332 = vcmask 261120
        %v334 = vsel %vm332, %v313, 0
        %v337 = vsel %vm332, %v314, 0
        %v340 = vsel %vm332, %v315, 0
        %v343 = vsel %vm332, %v316, 0
        %v346 = vsel %vm332, %v317, 0
        %v349 = vsel %vm332, %v318, 0
        %v352 = vsel %vm332, %v319, 0
        %v355 = vsel %vm332, %v320, 0
        %357 = vmatprep.subr.mxu0 0.0
        %358 = vmatpush1.msra.mxu0 %v321
        %359 = vmatprep.subr.mxu0 0.0
        %360 = vmatpush1.msra.mxu0 %v322
        %361 = vmatprep.subr.mxu0 0.0
        %362 = vmatpush1.msra.mxu0 %v323
        %363 = vmatprep.subr.mxu0 0.0
        %364 = vmatpush1.msra.mxu0 %v324
        %365 = vmatprep.subr.mxu0 0.0
        %366 = vmatpush1.msra.mxu0 0.0
        %367 = vmatprep.subr.mxu0 0.0
        %368 = vmatpush1.msra.mxu0 0.0
        %369 = vmatprep.subr.mxu0 0.0
        %370 = vmatpush1.msra.mxu0 0.0
        %371 = vmatprep.subr.mxu0 0.0
        %372 = vmatpush1.msra.mxu0 0.0
        %373 = vmatprep.subr.mxu0 0.0
        %374 = vmatpush1.msra.mxu0 0.0
        %375 = vmatprep.subr.mxu0 0.0
        %376 = vmatpush1.msra.mxu0 0.0
        %377 = vmatprep.subr.mxu0 0.0
        %378 = vmatpush1.msra.mxu0 0.0
        %379 = vmatprep.subr.mxu0 0.0
        %380 = vmatpush1.msra.mxu0 0.0
        %381 = vmatprep.subr.mxu0 0.0
        %382 = vmatpush1.msra.mxu0 0.0
        %383 = vmatprep.subr.mxu0 0.0
        %384 = vmatpush1.msra.mxu0 0.0
        %385 = vmatprep.subr.mxu0 0.0
        %386 = vmatpush1.msra.mxu0 0.0
        %387 = vmatprep.subr.mxu0 0.0
        %388 = vmatpush1.msra.mxu0 0.0
        %389 = vmatprep.subr.mxu0 0.0
        %390 = vmatpush1.msra.mxu0 0.0
        %391 = vmatprep.subr.mxu0 0.0
        %392 = vmatpush1.msra.mxu0 0.0
        %393 = vmatprep.subr.mxu0 0.0
        %394 = vmatpush1.msra.mxu0 0.0
        %395 = vmatprep.subr.mxu0 0.0
        %396 = vmatpush1.msra.mxu0 0.0
        %397 = vmatprep.subr.mxu0 0.0
        %398 = vmatpush1.msra.mxu0 0.0
        %399 = vmatprep.subr.mxu0 0.0
        %400 = vmatpush1.msra.mxu0 0.0
        %401 = vmatprep.subr.mxu0 0.0
        %402 = vmatpush1.msra.mxu0 0.0
        %403 = vmatprep.subr.mxu0 0.0
        %404 = vmatpush1.msra.mxu0 0.0
        %405 = vmatprep.subr.mxu0 0.0
        %406 = vmatpush1.msra.mxu0 0.0
        %407 = vmatprep.subr.mxu0 0.0
        %408 = vmatpush1.msra.mxu0 0.0
        %409 = vmatprep.subr.mxu0 0.0
        %410 = vmatpush1.msra.mxu0 0.0
        %411 = vmatprep.subr.mxu0 0.0
        %412 = vmatpush1.msra.mxu0 0.0
        %413 = vmatprep.subr.mxu0 0.0
        %414 = vmatpush1.msra.mxu0 0.0
        %415 = vmatprep.subr.mxu0 0.0
        %416 = vmatpush1.msra.mxu0 0.0
        %417 = vmatprep.subr.mxu0 0.0
        %418 = vmatpush1.msra.mxu0 0.0
        %419 = vmatprep.subr.mxu0 0.0
        %420 = vmatpush1.msra.mxu0 0.0
        %421 = vmatprep.mubr.f32.mxu0 0.0
        %422 = vmatmul.mubr.f32.gmra.mrb[0].mxu0 %v334
        %v423 = vpop.f32.mrb[0].mxu0
        %v424 = vadd.f32 %v330, %v423
        %v425 = vpop.f32.mrb[0].mxu0
        %426 = vmatprep.mubr.f32.mxu0 0.0
        %427 = vmatmul.mubr.f32.gmra.mrb[0].mxu0 %v337
        %v428 = vpop.f32.mrb[0].mxu0
        %v429 = vadd.f32 %v330, %v428
        %v430 = vpop.f32.mrb[0].mxu0
        %431 = vmatprep.mubr.f32.mxu0 0.0
        %432 = vmatmul.mubr.f32.gmra.mrb[0].mxu0 %v340
        %v433 = vpop.f32.mrb[0].mxu0
        %v434 = vadd.f32 %v330, %v433
        %v435 = vpop.f32.mrb[0].mxu0
        %436 = vmatprep.mubr.f32.mxu0 0.0
        %437 = vmatmul.mubr.f32.gmra.mrb[0].mxu0 %v343
        %v438 = vpop.f32.mrb[0].mxu0
        %v439 = vadd.f32 %v330, %v438
        %v440 = vpop.f32.mrb[0].mxu0
        %441 = vmatprep.mubr.f32.mxu0 0.0
        %442 = vmatmul.mubr.f32.gmra.mrb[0].mxu0 %v346
        %v443 = vpop.f32.mrb[0].mxu0
        %v444 = vadd.f32 %v330, %v443
        %v445 = vpop.f32.mrb[0].mxu0
        %446 = vmatprep.mubr.f32.mxu0 0.0
        %447 = vmatmul.mubr.f32.gmra.mrb[0].mxu0 %v349
        %v448 = vpop.f32.mrb[0].mxu0
        %v449 = vadd.f32 %v330, %v448
        %v450 = vpop.f32.mrb[0].mxu0
        %451 = vmatprep.mubr.f32.mxu0 0.0
        %452 = vmatmul.mubr.f32.gmra.mrb[0].mxu0 %v352
        %v453 = vpop.f32.mrb[0].mxu0
        %v454 = vadd.f32 %v330, %v453
        %v455 = vpop.f32.mrb[0].mxu0
        %456 = vmatprep.mubr.f32.mxu0 0.0
        %457 = vmatmul.mubr.f32.gmra.mrb[0].mxu0 %v355
        %v458 = vpop.f32.mrb[0].mxu0
        %v459 = vadd.f32 %v330, %v458
        %v460 = vpop.f32.mrb[0].mxu0
        %461 = vdwg.mxu0
        %v462 = vld [vmem:[#allocation7] sm:$0xff]
        %v463 = vld [vmem:[#allocation7 + $0x8] sm:$0xff]
        %v464 = vld [vmem:[#allocation7 + $0x10] sm:$0xff]
        %v465 = vld [vmem:[#allocation7 + $0x18] sm:$0xff]
        %v467 = vsel %vm332, 0.0, 0
        %469 = vmatprep.subr.mxu0 0.0
        %470 = vmatpush1.msra.mxu0 %v462
        %471 = vmatprep.subr.mxu0 0.0
        %472 = vmatpush1.msra.mxu0 %v463
        %473 = vmatprep.subr.mxu0 0.0
        %474 = vmatpush1.msra.mxu0 %v464
        %475 = vmatprep.subr.mxu0 0.0
        %476 = vmatpush1.msra.mxu0 %v465
        %477 = vmatprep.subr.mxu0 0.0
        %478 = vmatpush1.msra.mxu0 0.0
        %479 = vmatprep.subr.mxu0 0.0
        %480 = vmatpush1.msra.mxu0 0.0
        %481 = vmatprep.subr.mxu0 0.0
        %482 = vmatpush1.msra.mxu0 0.0
        %483 = vmatprep.subr.mxu0 0.0
        %484 = vmatpush1.msra.mxu0 0.0
        %485 = vmatprep.subr.mxu0 0.0
        %486 = vmatpush1.msra.mxu0 0.0
        %487 = vmatprep.subr.mxu0 0.0
        %488 = vmatpush1.msra.mxu0 0.0
        %489 = vmatprep.subr.mxu0 0.0
        %490 = vmatpush1.msra.mxu0 0.0
        %491 = vmatprep.subr.mxu0 0.0
        %492 = vmatpush1.msra.mxu0 0.0
        %493 = vmatprep.subr.mxu0 0.0
        %494 = vmatpush1.msra.mxu0 0.0
        %495 = vmatprep.subr.mxu0 0.0
        %496 = vmatpush1.msra.mxu0 0.0
        %497 = vmatprep.subr.mxu0 0.0
        %498 = vmatpush1.msra.mxu0 0.0
        %499 = vmatprep.subr.mxu0 0.0
        %500 = vmatpush1.msra.mxu0 0.0
        %501 = vmatprep.subr.mxu0 0.0
        %502 = vmatpush1.msra.mxu0 0.0
        %503 = vmatprep.subr.mxu0 0.0
        %504 = vmatpush1.msra.mxu0 0.0
        %505 = vmatprep.subr.mxu0 0.0
        %506 = vmatpush1.msra.mxu0 0.0
        %507 = vmatprep.subr.mxu0 0.0
        %508 = vmatpush1.msra.mxu0 0.0
        %509 = vmatprep.subr.mxu0 0.0
        %510 = vmatpush1.msra.mxu0 0.0
        %511 = vmatprep.subr.mxu0 0.0
        %512 = vmatpush1.msra.mxu0 0.0
        %513 = vmatprep.subr.mxu0 0.0
        %514 = vmatpush1.msra.mxu0 0.0
        %515 = vmatprep.subr.mxu0 0.0
        %516 = vmatpush1.msra.mxu0 0.0
        %517 = vmatprep.subr.mxu0 0.0
        %518 = vmatpush1.msra.mxu0 0.0
        %519 = vmatprep.subr.mxu0 0.0
        %520 = vmatpush1.msra.mxu0 0.0
        %521 = vmatprep.subr.mxu0 0.0
        %522 = vmatpush1.msra.mxu0 0.0
        %523 = vmatprep.subr.mxu0 0.0
        %524 = vmatpush1.msra.mxu0 0.0
        %525 = vmatprep.subr.mxu0 0.0
        %526 = vmatpush1.msra.mxu0 0.0
        %527 = vmatprep.subr.mxu0 0.0
        %528 = vmatpush1.msra.mxu0 0.0
        %529 = vmatprep.subr.mxu0 0.0
        %530 = vmatpush1.msra.mxu0 0.0
        %531 = vmatprep.subr.mxu0 0.0
        %532 = vmatpush1.msra.mxu0 0.0
        %533 = vmatprep.mubr.f32.mxu0 0.0
        %534 = vmatmul.mubr.f32.gmra.mrb[0].mxu0 %v467
        %v535 = vpop.f32.mrb[0].mxu0
        %v536 = vadd.f32 0.0, %v535
        %v537 = vpop.f32.mrb[0].mxu0
        %538 = vdwg.mxu0
        %v539 = vadd.f32 %v424, %v536
        %v540 = vxor.u32 %v539, 2147483648
        %v541 = vmul.f32 %v540, 1.442695
        %v542 = vpow.pop %v541
        %v543 = vadd.f32 %v542, 1.0
        %v544 = vrcp.pop %v543
        %v545 = vmul.f32 1.0, %v544
        %v546 = vtanh.pop %v539
        %v547 = vmul.f32 %v545, 0.0
        %549 = vrot.lane.b32.xlu0 %v546, 64
        %v550 = vpop.permute.xlu0 %549
        %v552 = vmul.f32 %v545, %v550
        %554 = vrot.lane.b32.xlu0 %v552, 32
        %v555 = vpop.permute.xlu0 %554
        %v557 = vadd.f32 %v547, %v555
        %v558 = vtanh.pop %v557
        %560 = vrot.lane.b32.xlu0 %v558, 64
        %v561 = vpop.permute.xlu0 %560
        %v563 = vmul.f32 %v545, %v561
        %565 = vrot.lane.b32.xlu0 %v563, 32
        %v566 = vpop.permute.xlu0 %565
        %v567 = vsel %vm332, %v566, 0
        %569 = vmatprep.subr.mxu0 0.0
        %570 = vmatpush1.msra.mxu0 %v462
        %571 = vmatprep.subr.mxu0 0.0
        %572 = vmatpush1.msra.mxu0 %v463
        %573 = vmatprep.subr.mxu0 0.0
        %574 = vmatpush1.msra.mxu0 %v464
        %575 = vmatprep.subr.mxu0 0.0
        %576 = vmatpush1.msra.mxu0 %v465
        %577 = vmatprep.subr.mxu0 0.0
        %578 = vmatpush1.msra.mxu0 0.0
        %579 = vmatprep.subr.mxu0 0.0
        %580 = vmatpush1.msra.mxu0 0.0
        %581 = vmatprep.subr.mxu0 0.0
        %582 = vmatpush1.msra.mxu0 0.0
        %583 = vmatprep.subr.mxu0 0.0
        %584 = vmatpush1.msra.mxu0 0.0
        %585 = vmatprep.subr.mxu0 0.0
        %586 = vmatpush1.msra.mxu0 0.0
        %587 = vmatprep.subr.mxu0 0.0
        %588 = vmatpush1.msra.mxu0 0.0
        %589 = vmatprep.subr.mxu0 0.0
        %590 = vmatpush1.msra.mxu0 0.0
        %591 = vmatprep.subr.mxu0 0.0
        %592 = vmatpush1.msra.mxu0 0.0
        %593 = vmatprep.subr.mxu0 0.0
        %594 = vmatpush1.msra.mxu0 0.0
        %595 = vmatprep.subr.mxu0 0.0
        %596 = vmatpush1.msra.mxu0 0.0
        %597 = vmatprep.subr.mxu0 0.0
        %598 = vmatpush1.msra.mxu0 0.0
        %599 = vmatprep.subr.mxu0 0.0
        %600 = vmatpush1.msra.mxu0 0.0
        %601 = vmatprep.subr.mxu0 0.0
        %602 = vmatpush1.msra.mxu0 0.0
        %603 = vmatprep.subr.mxu0 0.0
        %604 = vmatpush1.msra.mxu0 0.0
        %605 = vmatprep.subr.mxu0 0.0
        %606 = vmatpush1.msra.mxu0 0.0
        %607 = vmatprep.subr.mxu0 0.0
        %608 = vmatpush1.msra.mxu0 0.0
        %609 = vmatprep.subr.mxu0 0.0
        %610 = vmatpush1.msra.mxu0 0.0
        %611 = vmatprep.subr.mxu0 0.0
        %612 = vmatpush1.msra.mxu0 0.0
        %613 = vmatprep.subr.mxu0 0.0
        %614 = vmatpush1.msra.mxu0 0.0
        %615 = vmatprep.subr.mxu0 0.0
        %616 = vmatpush1.msra.mxu0 0.0
        %617 = vmatprep.subr.mxu0 0.0
        %618 = vmatpush1.msra.mxu0 0.0
        %619 = vmatprep.subr.mxu0 0.0
        %620 = vmatpush1.msra.mxu0 0.0
        %621 = vmatprep.subr.mxu0 0.0
        %622 = vmatpush1.msra.mxu0 0.0
        %623 = vmatprep.subr.mxu0 0.0
        %624 = vmatpush1.msra.mxu0 0.0
        %625 = vmatprep.subr.mxu0 0.0
        %626 = vmatpush1.msra.mxu0 0.0
        %627 = vmatprep.subr.mxu0 0.0
        %628 = vmatpush1.msra.mxu0 0.0
        %629 = vmatprep.subr.mxu0 0.0
        %630 = vmatpush1.msra.mxu0 0.0
        %631 = vmatprep.subr.mxu0 0.0
        %632 = vmatpush1.msra.mxu0 0.0
        %633 = vmatprep.mubr.f32.mxu0 0.0
        %634 = vmatmul.mubr.f32.gmra.mrb[0].mxu0 %v567
        %v635 = vpop.f32.mrb[0].mxu0
        %v636 = vadd.f32 0.0, %v635
        %v637 = vpop.f32.mrb[0].mxu0
        %638 = vdwg.mxu0
        %v639 = vadd.f32 %v429, %v636
        %v640 = vxor.u32 %v639, 2147483648
        %v641 = vmul.f32 %v640, 1.442695
        %v642 = vpow.pop %v641
        %v643 = vadd.f32 %v642, 1.0
        %v644 = vrcp.pop %v643
        %v645 = vmul.f32 1.0, %v644
        %v646 = vtanh.pop %v639
        %v647 = vmul.f32 %v645, %v557
        %649 = vrot.lane.b32.xlu0 %v646, 64
        %v650 = vpop.permute.xlu0 %649
        %v652 = vmul.f32 %v645, %v650
        %654 = vrot.lane.b32.xlu0 %v652, 32
        %v655 = vpop.permute.xlu0 %654
        %v657 = vadd.f32 %v647, %v655
        %v658 = vtanh.pop %v657
        %660 = vrot.lane.b32.xlu0 %v658, 64
        %v661 = vpop.permute.xlu0 %660
        %v663 = vmul.f32 %v645, %v661
        %665 = vrot.lane.b32.xlu0 %v663, 32
        %v666 = vpop.permute.xlu0 %665
        %v667 = vsel %vm332, %v666, 0
        %669 = vmatprep.subr.mxu0 0.0
        %670 = vmatpush1.msra.mxu0 %v462
        %671 = vmatprep.subr.mxu0 0.0
        %672 = vmatpush1.msra.mxu0 %v463
        %673 = vmatprep.subr.mxu0 0.0
        %674 = vmatpush1.msra.mxu0 %v464
        %675 = vmatprep.subr.mxu0 0.0
        %676 = vmatpush1.msra.mxu0 %v465
        %677 = vmatprep.subr.mxu0 0.0
        %678 = vmatpush1.msra.mxu0 0.0
        %679 = vmatprep.subr.mxu0 0.0
        %680 = vmatpush1.msra.mxu0 0.0
        %681 = vmatprep.subr.mxu0 0.0
        %682 = vmatpush1.msra.mxu0 0.0
        %683 = vmatprep.subr.mxu0 0.0
        %684 = vmatpush1.msra.mxu0 0.0
        %685 = vmatprep.subr.mxu0 0.0
        %686 = vmatpush1.msra.mxu0 0.0
        %687 = vmatprep.subr.mxu0 0.0
        %688 = vmatpush1.msra.mxu0 0.0
        %689 = vmatprep.subr.mxu0 0.0
        %690 = vmatpush1.msra.mxu0 0.0
        %691 = vmatprep.subr.mxu0 0.0
        %692 = vmatpush1.msra.mxu0 0.0
        %693 = vmatprep.subr.mxu0 0.0
        %694 = vmatpush1.msra.mxu0 0.0
        %695 = vmatprep.subr.mxu0 0.0
        %696 = vmatpush1.msra.mxu0 0.0
        %697 = vmatprep.subr.mxu0 0.0
        %698 = vmatpush1.msra.mxu0 0.0
        %699 = vmatprep.subr.mxu0 0.0
        %700 = vmatpush1.msra.mxu0 0.0
        %701 = vmatprep.subr.mxu0 0.0
        %702 = vmatpush1.msra.mxu0 0.0
        %703 = vmatprep.subr.mxu0 0.0
        %704 = vmatpush1.msra.mxu0 0.0
        %705 = vmatprep.subr.mxu0 0.0
        %706 = vmatpush1.msra.mxu0 0.0
        %707 = vmatprep.subr.mxu0 0.0
        %708 = vmatpush1.msra.mxu0 0.0
        %709 = vmatprep.subr.mxu0 0.0
        %710 = vmatpush1.msra.mxu0 0.0
        %711 = vmatprep.subr.mxu0 0.0
        %712 = vmatpush1.msra.mxu0 0.0
        %713 = vmatprep.subr.mxu0 0.0
        %714 = vmatpush1.msra.mxu0 0.0
        %715 = vmatprep.subr.mxu0 0.0
        %716 = vmatpush1.msra.mxu0 0.0
        %717 = vmatprep.subr.mxu0 0.0
        %718 = vmatpush1.msra.mxu0 0.0
        %719 = vmatprep.subr.mxu0 0.0
        %720 = vmatpush1.msra.mxu0 0.0
        %721 = vmatprep.subr.mxu0 0.0
        %722 = vmatpush1.msra.mxu0 0.0
        %723 = vmatprep.subr.mxu0 0.0
        %724 = vmatpush1.msra.mxu0 0.0
        %725 = vmatprep.subr.mxu0 0.0
        %726 = vmatpush1.msra.mxu0 0.0
        %727 = vmatprep.subr.mxu0 0.0
        %728 = vmatpush1.msra.mxu0 0.0
        %729 = vmatprep.subr.mxu0 0.0
        %730 = vmatpush1.msra.mxu0 0.0
        %731 = vmatprep.subr.mxu0 0.0
        %732 = vmatpush1.msra.mxu0 0.0
        %733 = vmatprep.mubr.f32.mxu0 0.0
        %734 = vmatmul.mubr.f32.gmra.mrb[0].mxu0 %v667
        %v735 = vpop.f32.mrb[0].mxu0
        %v736 = vadd.f32 0.0, %v735
        %v737 = vpop.f32.mrb[0].mxu0
        %738 = vdwg.mxu0
        %v739 = vadd.f32 %v434, %v736
        %v740 = vxor.u32 %v739, 2147483648
        %v741 = vmul.f32 %v740, 1.442695
        %v742 = vpow.pop %v741
        %v743 = vadd.f32 %v742, 1.0
        %v744 = vrcp.pop %v743
        %v745 = vmul.f32 1.0, %v744
        %v746 = vtanh.pop %v739
        %v747 = vmul.f32 %v745, %v657
        %749 = vrot.lane.b32.xlu0 %v746, 64
        %v750 = vpop.permute.xlu0 %749
        %v752 = vmul.f32 %v745, %v750
        %754 = vrot.lane.b32.xlu0 %v752, 32
        %v755 = vpop.permute.xlu0 %754
        %v757 = vadd.f32 %v747, %v755
        %v758 = vtanh.pop %v757
        %760 = vrot.lane.b32.xlu0 %v758, 64
        %v761 = vpop.permute.xlu0 %760
        %v763 = vmul.f32 %v745, %v761
        %765 = vrot.lane.b32.xlu0 %v763, 32
        %v766 = vpop.permute.xlu0 %765
        %v767 = vsel %vm332, %v766, 0
        %769 = vmatprep.subr.mxu0 0.0
        %770 = vmatpush1.msra.mxu0 %v462
        %771 = vmatprep.subr.mxu0 0.0
        %772 = vmatpush1.msra.mxu0 %v463
        %773 = vmatprep.subr.mxu0 0.0
        %774 = vmatpush1.msra.mxu0 %v464
        %775 = vmatprep.subr.mxu0 0.0
        %776 = vmatpush1.msra.mxu0 %v465
        %777 = vmatprep.subr.mxu0 0.0
        %778 = vmatpush1.msra.mxu0 0.0
        %779 = vmatprep.subr.mxu0 0.0
        %780 = vmatpush1.msra.mxu0 0.0
        %781 = vmatprep.subr.mxu0 0.0
        %782 = vmatpush1.msra.mxu0 0.0
        %783 = vmatprep.subr.mxu0 0.0
        %784 = vmatpush1.msra.mxu0 0.0
        %785 = vmatprep.subr.mxu0 0.0
        %786 = vmatpush1.msra.mxu0 0.0
        %787 = vmatprep.subr.mxu0 0.0
        %788 = vmatpush1.msra.mxu0 0.0
        %789 = vmatprep.subr.mxu0 0.0
        %790 = vmatpush1.msra.mxu0 0.0
        %791 = vmatprep.subr.mxu0 0.0
        %792 = vmatpush1.msra.mxu0 0.0
        %793 = vmatprep.subr.mxu0 0.0
        %794 = vmatpush1.msra.mxu0 0.0
        %795 = vmatprep.subr.mxu0 0.0
        %796 = vmatpush1.msra.mxu0 0.0
        %797 = vmatprep.subr.mxu0 0.0
        %798 = vmatpush1.msra.mxu0 0.0
        %799 = vmatprep.subr.mxu0 0.0
        %800 = vmatpush1.msra.mxu0 0.0
        %801 = vmatprep.subr.mxu0 0.0
        %802 = vmatpush1.msra.mxu0 0.0
        %803 = vmatprep.subr.mxu0 0.0
        %804 = vmatpush1.msra.mxu0 0.0
        %805 = vmatprep.subr.mxu0 0.0
        %806 = vmatpush1.msra.mxu0 0.0
        %807 = vmatprep.subr.mxu0 0.0
        %808 = vmatpush1.msra.mxu0 0.0
        %809 = vmatprep.subr.mxu0 0.0
        %810 = vmatpush1.msra.mxu0 0.0
        %811 = vmatprep.subr.mxu0 0.0
        %812 = vmatpush1.msra.mxu0 0.0
        %813 = vmatprep.subr.mxu0 0.0
        %814 = vmatpush1.msra.mxu0 0.0
        %815 = vmatprep.subr.mxu0 0.0
        %816 = vmatpush1.msra.mxu0 0.0
        %817 = vmatprep.subr.mxu0 0.0
        %818 = vmatpush1.msra.mxu0 0.0
        %819 = vmatprep.subr.mxu0 0.0
        %820 = vmatpush1.msra.mxu0 0.0
        %821 = vmatprep.subr.mxu0 0.0
        %822 = vmatpush1.msra.mxu0 0.0
        %823 = vmatprep.subr.mxu0 0.0
        %824 = vmatpush1.msra.mxu0 0.0
        %825 = vmatprep.subr.mxu0 0.0
        %826 = vmatpush1.msra.mxu0 0.0
        %827 = vmatprep.subr.mxu0 0.0
        %828 = vmatpush1.msra.mxu0 0.0
        %829 = vmatprep.subr.mxu0 0.0
        %830 = vmatpush1.msra.mxu0 0.0
        %831 = vmatprep.subr.mxu0 0.0
        %832 = vmatpush1.msra.mxu0 0.0
        %833 = vmatprep.mubr.f32.mxu0 0.0
        %834 = vmatmul.mubr.f32.gmra.mrb[0].mxu0 %v767
        %v835 = vpop.f32.mrb[0].mxu0
        %v836 = vadd.f32 0.0, %v835
        %v837 = vpop.f32.mrb[0].mxu0
        %838 = vdwg.mxu0
        %v839 = vadd.f32 %v439, %v836
        %v840 = vxor.u32 %v839, 2147483648
        %v841 = vmul.f32 %v840, 1.442695
        %v842 = vpow.pop %v841
        %v843 = vadd.f32 %v842, 1.0
        %v844 = vrcp.pop %v843
        %v845 = vmul.f32 1.0, %v844
        %v846 = vtanh.pop %v839
        %v847 = vmul.f32 %v845, %v757
        %849 = vrot.lane.b32.xlu0 %v846, 64
        %v850 = vpop.permute.xlu0 %849
        %v852 = vmul.f32 %v845, %v850
        %854 = vrot.lane.b32.xlu0 %v852, 32
        %v855 = vpop.permute.xlu0 %854
        %v857 = vadd.f32 %v847, %v855
        %v858 = vtanh.pop %v857
        %860 = vrot.lane.b32.xlu0 %v858, 64
        %v861 = vpop.permute.xlu0 %860
        %v863 = vmul.f32 %v845, %v861
        %865 = vrot.lane.b32.xlu0 %v863, 32
        %v866 = vpop.permute.xlu0 %865
        %v867 = vsel %vm332, %v866, 0
        %869 = vmatprep.subr.mxu0 0.0
        %870 = vmatpush1.msra.mxu0 %v462
        %871 = vmatprep.subr.mxu0 0.0
        %872 = vmatpush1.msra.mxu0 %v463
        %873 = vmatprep.subr.mxu0 0.0
        %874 = vmatpush1.msra.mxu0 %v464
        %875 = vmatprep.subr.mxu0 0.0
        %876 = vmatpush1.msra.mxu0 %v465
        %877 = vmatprep.subr.mxu0 0.0
        %878 = vmatpush1.msra.mxu0 0.0
        %879 = vmatprep.subr.mxu0 0.0
        %880 = vmatpush1.msra.mxu0 0.0
        %881 = vmatprep.subr.mxu0 0.0
        %882 = vmatpush1.msra.mxu0 0.0
        %883 = vmatprep.subr.mxu0 0.0
        %884 = vmatpush1.msra.mxu0 0.0
        %885 = vmatprep.subr.mxu0 0.0
        %886 = vmatpush1.msra.mxu0 0.0
        %887 = vmatprep.subr.mxu0 0.0
        %888 = vmatpush1.msra.mxu0 0.0
        %889 = vmatprep.subr.mxu0 0.0
        %890 = vmatpush1.msra.mxu0 0.0
        %891 = vmatprep.subr.mxu0 0.0
        %892 = vmatpush1.msra.mxu0 0.0
        %893 = vmatprep.subr.mxu0 0.0
        %894 = vmatpush1.msra.mxu0 0.0
        %895 = vmatprep.subr.mxu0 0.0
        %896 = vmatpush1.msra.mxu0 0.0
        %897 = vmatprep.subr.mxu0 0.0
        %898 = vmatpush1.msra.mxu0 0.0
        %899 = vmatprep.subr.mxu0 0.0
        %900 = vmatpush1.msra.mxu0 0.0
        %901 = vmatprep.subr.mxu0 0.0
        %902 = vmatpush1.msra.mxu0 0.0
        %903 = vmatprep.subr.mxu0 0.0
        %904 = vmatpush1.msra.mxu0 0.0
        %905 = vmatprep.subr.mxu0 0.0
        %906 = vmatpush1.msra.mxu0 0.0
        %907 = vmatprep.subr.mxu0 0.0
        %908 = vmatpush1.msra.mxu0 0.0
        %909 = vmatprep.subr.mxu0 0.0
        %910 = vmatpush1.msra.mxu0 0.0
        %911 = vmatprep.subr.mxu0 0.0
        %912 = vmatpush1.msra.mxu0 0.0
        %913 = vmatprep.subr.mxu0 0.0
        %914 = vmatpush1.msra.mxu0 0.0
        %915 = vmatprep.subr.mxu0 0.0
        %916 = vmatpush1.msra.mxu0 0.0
        %917 = vmatprep.subr.mxu0 0.0
        %918 = vmatpush1.msra.mxu0 0.0
        %919 = vmatprep.subr.mxu0 0.0
        %920 = vmatpush1.msra.mxu0 0.0
        %921 = vmatprep.subr.mxu0 0.0
        %922 = vmatpush1.msra.mxu0 0.0
        %923 = vmatprep.subr.mxu0 0.0
        %924 = vmatpush1.msra.mxu0 0.0
        %925 = vmatprep.subr.mxu0 0.0
        %926 = vmatpush1.msra.mxu0 0.0
        %927 = vmatprep.subr.mxu0 0.0
        %928 = vmatpush1.msra.mxu0 0.0
        %929 = vmatprep.subr.mxu0 0.0
        %930 = vmatpush1.msra.mxu0 0.0
        %931 = vmatprep.subr.mxu0 0.0
        %932 = vmatpush1.msra.mxu0 0.0
        %933 = vmatprep.mubr.f32.mxu0 0.0
        %934 = vmatmul.mubr.f32.gmra.mrb[0].mxu0 %v867
        %v935 = vpop.f32.mrb[0].mxu0
        %v936 = vadd.f32 0.0, %v935
        %v937 = vpop.f32.mrb[0].mxu0
        %938 = vdwg.mxu0
        %v939 = vadd.f32 %v444, %v936
        %v940 = vxor.u32 %v939, 2147483648
        %v941 = vmul.f32 %v940, 1.442695
        %v942 = vpow.pop %v941
        %v943 = vadd.f32 %v942, 1.0
        %v944 = vrcp.pop %v943
        %v945 = vmul.f32 1.0, %v944
        %v946 = vtanh.pop %v939
        %v947 = vmul.f32 %v945, %v857
        %949 = vrot.lane.b32.xlu0 %v946, 64
        %v950 = vpop.permute.xlu0 %949
        %v952 = vmul.f32 %v945, %v950
        %954 = vrot.lane.b32.xlu0 %v952, 32
        %v955 = vpop.permute.xlu0 %954
        %v957 = vadd.f32 %v947, %v955
        %v958 = vtanh.pop %v957
        %960 = vrot.lane.b32.xlu0 %v958, 64
        %v961 = vpop.permute.xlu0 %960
        %v963 = vmul.f32 %v945, %v961
        %965 = vrot.lane.b32.xlu0 %v963, 32
        %v966 = vpop.permute.xlu0 %965
        %v967 = vsel %vm332, %v966, 0
        %969 = vmatprep.subr.mxu0 0.0
        %970 = vmatpush1.msra.mxu0 %v462
        %971 = vmatprep.subr.mxu0 0.0
        %972 = vmatpush1.msra.mxu0 %v463
        %973 = vmatprep.subr.mxu0 0.0
        %974 = vmatpush1.msra.mxu0 %v464
        %975 = vmatprep.subr.mxu0 0.0
        %976 = vmatpush1.msra.mxu0 %v465
        %977 = vmatprep.subr.mxu0 0.0
        %978 = vmatpush1.msra.mxu0 0.0
        %979 = vmatprep.subr.mxu0 0.0
        %980 = vmatpush1.msra.mxu0 0.0
        %981 = vmatprep.subr.mxu0 0.0
        %982 = vmatpush1.msra.mxu0 0.0
        %983 = vmatprep.subr.mxu0 0.0
        %984 = vmatpush1.msra.mxu0 0.0
        %985 = vmatprep.subr.mxu0 0.0
        %986 = vmatpush1.msra.mxu0 0.0
        %987 = vmatprep.subr.mxu0 0.0
        %988 = vmatpush1.msra.mxu0 0.0
        %989 = vmatprep.subr.mxu0 0.0
        %990 = vmatpush1.msra.mxu0 0.0
        %991 = vmatprep.subr.mxu0 0.0
        %992 = vmatpush1.msra.mxu0 0.0
        %993 = vmatprep.subr.mxu0 0.0
        %994 = vmatpush1.msra.mxu0 0.0
        %995 = vmatprep.subr.mxu0 0.0
        %996 = vmatpush1.msra.mxu0 0.0
        %997 = vmatprep.subr.mxu0 0.0
        %998 = vmatpush1.msra.mxu0 0.0
        %999 = vmatprep.subr.mxu0 0.0
        %1000 = vmatpush1.msra.mxu0 0.0
        %1001 = vmatprep.subr.mxu0 0.0
        %1002 = vmatpush1.msra.mxu0 0.0
        %1003 = vmatprep.subr.mxu0 0.0
        %1004 = vmatpush1.msra.mxu0 0.0
        %1005 = vmatprep.subr.mxu0 0.0
        %1006 = vmatpush1.msra.mxu0 0.0
        %1007 = vmatprep.subr.mxu0 0.0
        %1008 = vmatpush1.msra.mxu0 0.0
        %1009 = vmatprep.subr.mxu0 0.0
        %1010 = vmatpush1.msra.mxu0 0.0
        %1011 = vmatprep.subr.mxu0 0.0
        %1012 = vmatpush1.msra.mxu0 0.0
        %1013 = vmatprep.subr.mxu0 0.0
        %1014 = vmatpush1.msra.mxu0 0.0
        %1015 = vmatprep.subr.mxu0 0.0
        %1016 = vmatpush1.msra.mxu0 0.0
        %1017 = vmatprep.subr.mxu0 0.0
        %1018 = vmatpush1.msra.mxu0 0.0
        %1019 = vmatprep.subr.mxu0 0.0
        %1020 = vmatpush1.msra.mxu0 0.0
        %1021 = vmatprep.subr.mxu0 0.0
        %1022 = vmatpush1.msra.mxu0 0.0
        %1023 = vmatprep.subr.mxu0 0.0
        %1024 = vmatpush1.msra.mxu0 0.0
        %1025 = vmatprep.subr.mxu0 0.0
        %1026 = vmatpush1.msra.mxu0 0.0
        %1027 = vmatprep.subr.mxu0 0.0
        %1028 = vmatpush1.msra.mxu0 0.0
        %1029 = vmatprep.subr.mxu0 0.0
        %1030 = vmatpush1.msra.mxu0 0.0
        %1031 = vmatprep.subr.mxu0 0.0
        %1032 = vmatpush1.msra.mxu0 0.0
        %1033 = vmatprep.mubr.f32.mxu0 0.0
        %1034 = vmatmul.mubr.f32.gmra.mrb[0].mxu0 %v967
        %v1035 = vpop.f32.mrb[0].mxu0
        %v1036 = vadd.f32 0.0, %v1035
        %v1037 = vpop.f32.mrb[0].mxu0
        %1038 = vdwg.mxu0
        %v1039 = vadd.f32 %v449, %v1036
        %v1040 = vxor.u32 %v1039, 2147483648
        %v1041 = vmul.f32 %v1040, 1.442695
        %v1042 = vpow.pop %v1041
        %v1043 = vadd.f32 %v1042, 1.0
        %v1044 = vrcp.pop %v1043
        %v1045 = vmul.f32 1.0, %v1044
        %v1046 = vtanh.pop %v1039
        %v1047 = vmul.f32 %v1045, %v957
        %1049 = vrot.lane.b32.xlu0 %v1046, 64
        %v1050 = vpop.permute.xlu0 %1049
        %v1052 = vmul.f32 %v1045, %v1050
        %1054 = vrot.lane.b32.xlu0 %v1052, 32
        %v1055 = vpop.permute.xlu0 %1054
        %v1057 = vadd.f32 %v1047, %v1055
        %v1058 = vtanh.pop %v1057
        %1060 = vrot.lane.b32.xlu0 %v1058, 64
        %v1061 = vpop.permute.xlu0 %1060
        %v1063 = vmul.f32 %v1045, %v1061
        %1065 = vrot.lane.b32.xlu0 %v1063, 32
        %v1066 = vpop.permute.xlu0 %1065
        %v1067 = vsel %vm332, %v1066, 0
        %1069 = vmatprep.subr.mxu0 0.0
        %1070 = vmatpush1.msra.mxu0 %v462
        %1071 = vmatprep.subr.mxu0 0.0
        %1072 = vmatpush1.msra.mxu0 %v463
        %1073 = vmatprep.subr.mxu0 0.0
        %1074 = vmatpush1.msra.mxu0 %v464
        %1075 = vmatprep.subr.mxu0 0.0
        %1076 = vmatpush1.msra.mxu0 %v465
        %1077 = vmatprep.subr.mxu0 0.0
        %1078 = vmatpush1.msra.mxu0 0.0
        %1079 = vmatprep.subr.mxu0 0.0
        %1080 = vmatpush1.msra.mxu0 0.0
        %1081 = vmatprep.subr.mxu0 0.0
        %1082 = vmatpush1.msra.mxu0 0.0
        %1083 = vmatprep.subr.mxu0 0.0
        %1084 = vmatpush1.msra.mxu0 0.0
        %1085 = vmatprep.subr.mxu0 0.0
        %1086 = vmatpush1.msra.mxu0 0.0
        %1087 = vmatprep.subr.mxu0 0.0
        %1088 = vmatpush1.msra.mxu0 0.0
        %1089 = vmatprep.subr.mxu0 0.0
        %1090 = vmatpush1.msra.mxu0 0.0
        %1091 = vmatprep.subr.mxu0 0.0
        %1092 = vmatpush1.msra.mxu0 0.0
        %1093 = vmatprep.subr.mxu0 0.0
        %1094 = vmatpush1.msra.mxu0 0.0
        %1095 = vmatprep.subr.mxu0 0.0
        %1096 = vmatpush1.msra.mxu0 0.0
        %1097 = vmatprep.subr.mxu0 0.0
        %1098 = vmatpush1.msra.mxu0 0.0
        %1099 = vmatprep.subr.mxu0 0.0
        %1100 = vmatpush1.msra.mxu0 0.0
        %1101 = vmatprep.subr.mxu0 0.0
        %1102 = vmatpush1.msra.mxu0 0.0
        %1103 = vmatprep.subr.mxu0 0.0
        %1104 = vmatpush1.msra.mxu0 0.0
        %1105 = vmatprep.subr.mxu0 0.0
        %1106 = vmatpush1.msra.mxu0 0.0
        %1107 = vmatprep.subr.mxu0 0.0
        %1108 = vmatpush1.msra.mxu0 0.0
        %1109 = vmatprep.subr.mxu0 0.0
        %1110 = vmatpush1.msra.mxu0 0.0
        %1111 = vmatprep.subr.mxu0 0.0
        %1112 = vmatpush1.msra.mxu0 0.0
        %1113 = vmatprep.subr.mxu0 0.0
        %1114 = vmatpush1.msra.mxu0 0.0
        %1115 = vmatprep.subr.mxu0 0.0
        %1116 = vmatpush1.msra.mxu0 0.0
        %1117 = vmatprep.subr.mxu0 0.0
        %1118 = vmatpush1.msra.mxu0 0.0
        %1119 = vmatprep.subr.mxu0 0.0
        %1120 = vmatpush1.msra.mxu0 0.0
        %1121 = vmatprep.subr.mxu0 0.0
        %1122 = vmatpush1.msra.mxu0 0.0
        %1123 = vmatprep.subr.mxu0 0.0
        %1124 = vmatpush1.msra.mxu0 0.0
        %1125 = vmatprep.subr.mxu0 0.0
        %1126 = vmatpush1.msra.mxu0 0.0
        %1127 = vmatprep.subr.mxu0 0.0
        %1128 = vmatpush1.msra.mxu0 0.0
        %1129 = vmatprep.subr.mxu0 0.0
        %1130 = vmatpush1.msra.mxu0 0.0
        %1131 = vmatprep.subr.mxu0 0.0
        %1132 = vmatpush1.msra.mxu0 0.0
        %1133 = vmatprep.mubr.f32.mxu0 0.0
        %1134 = vmatmul.mubr.f32.gmra.mrb[0].mxu0 %v1067
        %v1135 = vpop.f32.mrb[0].mxu0
        %v1136 = vadd.f32 0.0, %v1135
        %v1137 = vpop.f32.mrb[0].mxu0
        %1138 = vdwg.mxu0
        %v1139 = vadd.f32 %v454, %v1136
        %v1140 = vxor.u32 %v1139, 2147483648
        %v1141 = vmul.f32 %v1140, 1.442695
        %v1142 = vpow.pop %v1141
        %v1143 = vadd.f32 %v1142, 1.0
        %v1144 = vrcp.pop %v1143
        %v1145 = vmul.f32 1.0, %v1144
        %v1146 = vtanh.pop %v1139
        %v1147 = vmul.f32 %v1145, %v1057
        %1149 = vrot.lane.b32.xlu0 %v1146, 64
        %v1150 = vpop.permute.xlu0 %1149
        %v1152 = vmul.f32 %v1145, %v1150
        %1154 = vrot.lane.b32.xlu0 %v1152, 32
        %v1155 = vpop.permute.xlu0 %1154
        %v1157 = vadd.f32 %v1147, %v1155
        %v1158 = vtanh.pop %v1157
        %1160 = vrot.lane.b32.xlu0 %v1158, 64
        %v1161 = vpop.permute.xlu0 %1160
        %v1163 = vmul.f32 %v1145, %v1161
        %1165 = vrot.lane.b32.xlu0 %v1163, 32
        %v1166 = vpop.permute.xlu0 %1165
        %v1167 = vsel %vm332, %v1166, 0
        %1169 = vmatprep.subr.mxu0 0.0
        %1170 = vmatpush1.msra.mxu0 %v462
        %1171 = vmatprep.subr.mxu0 0.0
        %1172 = vmatpush1.msra.mxu0 %v463
        %1173 = vmatprep.subr.mxu0 0.0
        %1174 = vmatpush1.msra.mxu0 %v464
        %1175 = vmatprep.subr.mxu0 0.0
        %1176 = vmatpush1.msra.mxu0 %v465
        %1177 = vmatprep.subr.mxu0 0.0
        %1178 = vmatpush1.msra.mxu0 0.0
        %1179 = vmatprep.subr.mxu0 0.0
        %1180 = vmatpush1.msra.mxu0 0.0
        %1181 = vmatprep.subr.mxu0 0.0
        %1182 = vmatpush1.msra.mxu0 0.0
        %1183 = vmatprep.subr.mxu0 0.0
        %1184 = vmatpush1.msra.mxu0 0.0
        %1185 = vmatprep.subr.mxu0 0.0
        %1186 = vmatpush1.msra.mxu0 0.0
        %1187 = vmatprep.subr.mxu0 0.0
        %1188 = vmatpush1.msra.mxu0 0.0
        %1189 = vmatprep.subr.mxu0 0.0
        %1190 = vmatpush1.msra.mxu0 0.0
        %1191 = vmatprep.subr.mxu0 0.0
        %1192 = vmatpush1.msra.mxu0 0.0
        %1193 = vmatprep.subr.mxu0 0.0
        %1194 = vmatpush1.msra.mxu0 0.0
        %1195 = vmatprep.subr.mxu0 0.0
        %1196 = vmatpush1.msra.mxu0 0.0
        %1197 = vmatprep.subr.mxu0 0.0
        %1198 = vmatpush1.msra.mxu0 0.0
        %1199 = vmatprep.subr.mxu0 0.0
        %1200 = vmatpush1.msra.mxu0 0.0
        %1201 = vmatprep.subr.mxu0 0.0
        %1202 = vmatpush1.msra.mxu0 0.0
        %1203 = vmatprep.subr.mxu0 0.0
        %1204 = vmatpush1.msra.mxu0 0.0
        %1205 = vmatprep.subr.mxu0 0.0
        %1206 = vmatpush1.msra.mxu0 0.0
        %1207 = vmatprep.subr.mxu0 0.0
        %1208 = vmatpush1.msra.mxu0 0.0
        %1209 = vmatprep.subr.mxu0 0.0
        %1210 = vmatpush1.msra.mxu0 0.0
        %1211 = vmatprep.subr.mxu0 0.0
        %1212 = vmatpush1.msra.mxu0 0.0
        %1213 = vmatprep.subr.mxu0 0.0
        %1214 = vmatpush1.msra.mxu0 0.0
        %1215 = vmatprep.subr.mxu0 0.0
        %1216 = vmatpush1.msra.mxu0 0.0
        %1217 = vmatprep.subr.mxu0 0.0
        %1218 = vmatpush1.msra.mxu0 0.0
        %1219 = vmatprep.subr.mxu0 0.0
        %1220 = vmatpush1.msra.mxu0 0.0
        %1221 = vmatprep.subr.mxu0 0.0
        %1222 = vmatpush1.msra.mxu0 0.0
        %1223 = vmatprep.subr.mxu0 0.0
        %1224 = vmatpush1.msra.mxu0 0.0
        %1225 = vmatprep.subr.mxu0 0.0
        %1226 = vmatpush1.msra.mxu0 0.0
        %1227 = vmatprep.subr.mxu0 0.0
        %1228 = vmatpush1.msra.mxu0 0.0
        %1229 = vmatprep.subr.mxu0 0.0
        %1230 = vmatpush1.msra.mxu0 0.0
        %1231 = vmatprep.subr.mxu0 0.0
        %1232 = vmatpush1.msra.mxu0 0.0
        %1233 = vmatprep.mubr.f32.mxu0 0.0
        %1234 = vmatmul.mubr.f32.gmra.mrb[0].mxu0 %v1167
        %v1235 = vpop.f32.mrb[0].mxu0
        %v1236 = vadd.f32 0.0, %v1235
        %v1237 = vpop.f32.mrb[0].mxu0
        %1238 = vdwg.mxu0
        %v1239 = vadd.f32 %v459, %v1236
        %v1240 = vxor.u32 %v1239, 2147483648
        %v1241 = vmul.f32 %v1240, 1.442695
        %v1242 = vpow.pop %v1241
        %v1243 = vadd.f32 %v1242, 1.0
        %v1244 = vrcp.pop %v1243
        %v1245 = vmul.f32 1.0, %v1244
        %v1246 = vtanh.pop %v1239
        %v1247 = vmul.f32 %v1245, %v1157
        %1249 = vrot.lane.b32.xlu0 %v1246, 64
        %v1250 = vpop.permute.xlu0 %1249
        %v1252 = vmul.f32 %v1245, %v1250
        %1254 = vrot.lane.b32.xlu0 %v1252, 32
        %v1255 = vpop.permute.xlu0 %1254
        %v1257 = vadd.f32 %v1247, %v1255
        %v1258 = vtanh.pop %v1257
        %1260 = vrot.lane.b32.xlu0 %v1258, 64
        %v1261 = vpop.permute.xlu0 %1260
        %v1263 = vmul.f32 %v1245, %v1261
        %v1264 = vld [vmem:[#allocation8] sm:$0xff]
        %v1265 = vld [vmem:[#allocation8 + $0x8] sm:$0xff]
        %v1266 = vld [vmem:[#allocation8 + $0x10] sm:$0xff]
        %v1267 = vld [vmem:[#allocation8 + $0x18] sm:$0xff]
        %v1268 = vld [vmem:[%s5] sm:$0x1]
        %v1270 = vlaneseq
        %v1271 = vshrl.u32 %v1270, 7
        %v1272 = vsub.s32 0, %v1271
        %v1273 = vrot.slane %v1268, %v1272
        %1276 = vrot.lane.b32.xlu0 %v1263, 32
        %v1277 = vpop.permute.xlu0 %1276
        %v1278 = vsel %vm332, %v1277, 0
        %1280 = vmatprep.subr.mxu0 0.0
        %1281 = vmatpush1.msra.mxu0 %v1264
        %1282 = vmatprep.subr.mxu0 0.0
        %1283 = vmatpush1.msra.mxu0 %v1265
        %1284 = vmatprep.subr.mxu0 0.0
        %1285 = vmatpush1.msra.mxu0 %v1266
        %1286 = vmatprep.subr.mxu0 0.0
        %1287 = vmatpush1.msra.mxu0 %v1267
        %1288 = vmatprep.subr.mxu0 0.0
        %1289 = vmatpush1.msra.mxu0 0.0
        %1290 = vmatprep.subr.mxu0 0.0
        %1291 = vmatpush1.msra.mxu0 0.0
        %1292 = vmatprep.subr.mxu0 0.0
        %1293 = vmatpush1.msra.mxu0 0.0
        %1294 = vmatprep.subr.mxu0 0.0
        %1295 = vmatpush1.msra.mxu0 0.0
        %1296 = vmatprep.subr.mxu0 0.0
        %1297 = vmatpush1.msra.mxu0 0.0
        %1298 = vmatprep.subr.mxu0 0.0
        %1299 = vmatpush1.msra.mxu0 0.0
        %1300 = vmatprep.subr.mxu0 0.0
        %1301 = vmatpush1.msra.mxu0 0.0
        %1302 = vmatprep.subr.mxu0 0.0
        %1303 = vmatpush1.msra.mxu0 0.0
        %1304 = vmatprep.subr.mxu0 0.0
        %1305 = vmatpush1.msra.mxu0 0.0
        %1306 = vmatprep.subr.mxu0 0.0
        %1307 = vmatpush1.msra.mxu0 0.0
        %1308 = vmatprep.subr.mxu0 0.0
        %1309 = vmatpush1.msra.mxu0 0.0
        %1310 = vmatprep.subr.mxu0 0.0
        %1311 = vmatpush1.msra.mxu0 0.0
        %1312 = vmatprep.subr.mxu0 0.0
        %1313 = vmatpush1.msra.mxu0 0.0
        %1314 = vmatprep.subr.mxu0 0.0
        %1315 = vmatpush1.msra.mxu0 0.0
        %1316 = vmatprep.subr.mxu0 0.0
        %1317 = vmatpush1.msra.mxu0 0.0
        %1318 = vmatprep.subr.mxu0 0.0
        %1319 = vmatpush1.msra.mxu0 0.0
        %1320 = vmatprep.subr.mxu0 0.0
        %1321 = vmatpush1.msra.mxu0 0.0
        %1322 = vmatprep.subr.mxu0 0.0
        %1323 = vmatpush1.msra.mxu0 0.0
        %1324 = vmatprep.subr.mxu0 0.0
        %1325 = vmatpush1.msra.mxu0 0.0
        %1326 = vmatprep.subr.mxu0 0.0
        %1327 = vmatpush1.msra.mxu0 0.0
        %1328 = vmatprep.subr.mxu0 0.0
        %1329 = vmatpush1.msra.mxu0 0.0
        %1330 = vmatprep.subr.mxu0 0.0
        %1331 = vmatpush1.msra.mxu0 0.0
        %1332 = vmatprep.subr.mxu0 0.0
        %1333 = vmatpush1.msra.mxu0 0.0
        %1334 = vmatprep.subr.mxu0 0.0
        %1335 = vmatpush1.msra.mxu0 0.0
        %1336 = vmatprep.subr.mxu0 0.0
        %1337 = vmatpush1.msra.mxu0 0.0
        %1338 = vmatprep.subr.mxu0 0.0
        %1339 = vmatpush1.msra.mxu0 0.0
        %1340 = vmatprep.subr.mxu0 0.0
        %1341 = vmatpush1.msra.mxu0 0.0
        %1342 = vmatprep.subr.mxu0 0.0
        %1343 = vmatpush1.msra.mxu0 0.0
        %1344 = vmatprep.mubr.f32.mxu0 0.0
        %1345 = vmatmul.mubr.f32.gmra.mrb[0].mxu0 %v567
        %v1346 = vpop.f32.mrb[0].mxu0
        %v1347 = vadd.f32 %v1273, %v1346
        %v1348 = vpop.f32.mrb[0].mxu0
        %1349 = vmatprep.mubr.f32.mxu0 0.0
        %1350 = vmatmul.mubr.f32.gmra.mrb[0].mxu0 %v667
        %v1351 = vpop.f32.mrb[0].mxu0
        %v1352 = vadd.f32 %v1273, %v1351
        %v1353 = vpop.f32.mrb[0].mxu0
        %1354 = vmatprep.mubr.f32.mxu0 0.0
        %1355 = vmatmul.mubr.f32.gmra.mrb[0].mxu0 %v767
        %v1356 = vpop.f32.mrb[0].mxu0
        %v1357 = vadd.f32 %v1273, %v1356
        %v1358 = vpop.f32.mrb[0].mxu0
        %1359 = vmatprep.mubr.f32.mxu0 0.0
        %1360 = vmatmul.mubr.f32.gmra.mrb[0].mxu0 %v867
        %v1361 = vpop.f32.mrb[0].mxu0
        %v1362 = vadd.f32 %v1273, %v1361
        %v1363 = vpop.f32.mrb[0].mxu0
        %1364 = vmatprep.mubr.f32.mxu0 0.0
        %1365 = vmatmul.mubr.f32.gmra.mrb[0].mxu0 %v967
        %v1366 = vpop.f32.mrb[0].mxu0
        %v1367 = vadd.f32 %v1273, %v1366
        %v1368 = vpop.f32.mrb[0].mxu0
        %1369 = vmatprep.mubr.f32.mxu0 0.0
        %1370 = vmatmul.mubr.f32.gmra.mrb[0].mxu0 %v1067
        %v1371 = vpop.f32.mrb[0].mxu0
        %v1372 = vadd.f32 %v1273, %v1371
        %v1373 = vpop.f32.mrb[0].mxu0
        %1374 = vmatprep.mubr.f32.mxu0 0.0
        %1375 = vmatmul.mubr.f32.gmra.mrb[0].mxu0 %v1167
        %v1376 = vpop.f32.mrb[0].mxu0
        %v1377 = vadd.f32 %v1273, %v1376
        %v1378 = vpop.f32.mrb[0].mxu0
        %1379 = vmatprep.mubr.f32.mxu0 0.0
        %1380 = vmatmul.mubr.f32.gmra.mrb[0].mxu0 %v1278
        %v1381 = vpop.f32.mrb[0].mxu0
        %v1382 = vadd.f32 %v1273, %v1381
        %v1383 = vpop.f32.mrb[0].mxu0
        %1384 = vdwg.mxu0
        %1385 = vmax.xlane.f32.xlu0 %v1347
        %v1386 = vpop.xlane.xlu0 %1385
        %1387 = vmax.xlane.f32.xlu0 %v1352
        %v1388 = vpop.xlane.xlu0 %1387
        %1389 = vmax.xlane.f32.xlu0 %v1357
        %v1390 = vpop.xlane.xlu0 %1389
        %1391 = vmax.xlane.f32.xlu0 %v1362
        %v1392 = vpop.xlane.xlu0 %1391
        %1393 = vmax.xlane.f32.xlu0 %v1367
        %v1394 = vpop.xlane.xlu0 %1393
        %1395 = vmax.xlane.f32.xlu0 %v1372
        %v1396 = vpop.xlane.xlu0 %1395
        %1397 = vmax.xlane.f32.xlu0 %v1377
        %v1398 = vpop.xlane.xlu0 %1397
        %1399 = vmax.xlane.f32.xlu0 %v1382
        %v1400 = vpop.xlane.xlu0 %1399
        %v1401 = vsub.f32 %v1347, %v1386
        %v1402 = vsub.f32 %v1352, %v1388
        %v1403 = vsub.f32 %v1357, %v1390
        %v1404 = vsub.f32 %v1362, %v1392
        %v1405 = vsub.f32 %v1367, %v1394
        %v1406 = vsub.f32 %v1372, %v1396
        %v1407 = vsub.f32 %v1377, %v1398
        %v1408 = vsub.f32 %v1382, %v1400
        %v1409 = vmul.f32 %v1401, 1.442695
        %v1410 = vpow.pop %v1409
        %v1411 = vmul.f32 %v1402, 1.442695
        %v1412 = vpow.pop %v1411
        %v1413 = vmul.f32 %v1403, 1.442695
        %v1414 = vpow.pop %v1413
        %v1415 = vmul.f32 %v1404, 1.442695
        %v1416 = vpow.pop %v1415
        %v1417 = vmul.f32 %v1405, 1.442695
        %v1418 = vpow.pop %v1417
        %v1419 = vmul.f32 %v1406, 1.442695
        %v1420 = vpow.pop %v1419
        %v1421 = vmul.f32 %v1407, 1.442695
        %v1422 = vpow.pop %v1421
        %v1423 = vmul.f32 %v1408, 1.442695
        %v1424 = vpow.pop %v1423
        %1425 = vadd.xlane.f32.xlu0 %v1410
        %v1426 = vpop.xlane.xlu0 %1425
        %1427 = vadd.xlane.f32.xlu0 %v1412
        %v1428 = vpop.xlane.xlu0 %1427
        %1429 = vadd.xlane.f32.xlu0 %v1414
        %v1430 = vpop.xlane.xlu0 %1429
        %1431 = vadd.xlane.f32.xlu0 %v1416
        %v1432 = vpop.xlane.xlu0 %1431
        %1433 = vadd.xlane.f32.xlu0 %v1418
        %v1434 = vpop.xlane.xlu0 %1433
        %1435 = vadd.xlane.f32.xlu0 %v1420
        %v1436 = vpop.xlane.xlu0 %1435
        %1437 = vadd.xlane.f32.xlu0 %v1422
        %v1438 = vpop.xlane.xlu0 %1437
        %1439 = vadd.xlane.f32.xlu0 %v1424
        %v1440 = vpop.xlane.xlu0 %1439
        %v1441 = vlog2.pop %v1426
        %v1442 = vmul.f32 %v1441, 0.6931472
        %v1443 = vlog2.pop %v1428
        %v1444 = vmul.f32 %v1443, 0.6931472
        %v1445 = vlog2.pop %v1430
        %v1446 = vmul.f32 %v1445, 0.6931472
        %v1447 = vlog2.pop %v1432
        %v1448 = vmul.f32 %v1447, 0.6931472
        %v1449 = vlog2.pop %v1434
        %v1450 = vmul.f32 %v1449, 0.6931472
        %v1451 = vlog2.pop %v1436
        %v1452 = vmul.f32 %v1451, 0.6931472
        %v1453 = vlog2.pop %v1438
        %v1454 = vmul.f32 %v1453, 0.6931472
        %v1455 = vlog2.pop %v1440
        %v1456 = vmul.f32 %v1455, 0.6931472
        %v1457 = vadd.f32 %v1386, %v1442
        %v1458 = vadd.f32 %v1388, %v1444
        %v1459 = vadd.f32 %v1390, %v1446
        %v1460 = vadd.f32 %v1392, %v1448
        %v1461 = vadd.f32 %v1394, %v1450
        %v1462 = vadd.f32 %v1396, %v1452
        %v1463 = vadd.f32 %v1398, %v1454
        %v1464 = vadd.f32 %v1400, %v1456
        %v1465 = vsub.f32 %v1347, %v1457
        %v1466 = vsub.f32 %v1352, %v1458
        %v1467 = vsub.f32 %v1357, %v1459
        %v1468 = vsub.f32 %v1362, %v1460
        %v1469 = vsub.f32 %v1367, %v1461
        %v1470 = vsub.f32 %v1372, %v1462
        %v1471 = vsub.f32 %v1377, %v1463
        %v1472 = vsub.f32 %v1382, %v1464
        %1473 = vst [vmem:[%s312] sm:$0xff] %v1465
        %1474 = vst [vmem:[%s312 + $0x8] sm:$0xff] %v1466
        %1475 = vst [vmem:[%s312 + $0x10] sm:$0xff] %v1467
        %1476 = vst [vmem:[%s312 + $0x18] sm:$0xff] %v1468
        %1477 = vst [vmem:[%s312 + $0x20] sm:$0xff] %v1469
        %1478 = vst [vmem:[%s312 + $0x28] sm:$0xff] %v1470
        %1479 = vst [vmem:[%s312 + $0x30] sm:$0xff] %v1471
        %1480 = vst [vmem:[%s312 + $0x38] sm:$0xff] %v1472
        %s1481 = sand.u32 %s164, 1
        %s1482 = scalar_lea.sflag [#allocation4], %s1481
        %s1483 = sand.u32 %s164, 1
        %s1484 = smul.addr %s1483, 64
        %s1485 = scalar_lea.vmem [#allocation10], %s1484
        // Predicated region
        $region61: #{tpu_custom_call.1} parent=43 // pred_check
          %p1486 = pneg %p174
        $region62: #{tpu_custom_call.1} parent=43 // pred_check_branch
          %1488 = sbr.rel (%p1486) target = $region64
        $region63: #{tpu_custom_call.1} parent=43 // pred_region
          %s1490 = ssub.s32 1024, 1024
          %1491 = vsyncadd %s1482, %s1490
          %s1492 = smul.addr %s25, 128
          %s1493 = scalar_lea.hbm %s6, %s1492
          %s1494 = sshll.u32 %s1485, 4
          %s1495 = int_to_ptr.vmem [resolvable:$true] %s1494
          %1500 = dma.vmem_to_hbm [thread:$0]  %s1495, 1024, %s1493, %s1482, 128, 256, 8
        $region64: #{tpu_custom_call.1} parent=43 // pred_fallthru
          _
      $region44: #{tpu_custom_call.1} parent=5 // pred_fallthru
        _
      %p1501 = scmp.le.s32.totalorder 2, %s20
      // Predicated region
      $region65: #{tpu_custom_call.1} parent=5 // pred_check
        %p1502 = pneg %p1501
      $region66: #{tpu_custom_call.1} parent=5 // pred_check_branch
        %1504 = sbr.rel (%p1502) target = $region68
      $region67: #{tpu_custom_call.1} parent=5 // pred_region
        %s1505 = ssub.s32 %s20, 2
        // Predicated region
        $region69: #{tpu_custom_call.1} parent=67 // pred_check
          %p1506 = pneg %p180
        $region70: #{tpu_custom_call.1} parent=67 // pred_check_branch
          %1508 = sbr.rel (%p1506) target = $region72
        $region71: #{tpu_custom_call.1} parent=67 // pred_region
          %s1509 = sand.u32 %s165, 1
          %s1510 = scalar_lea.sflag [#allocation4], %s1509
          %s1511 = sand.u32 %s165, 1
          %s1512 = smul.addr %s1511, 64
          %s1513 = scalar_lea.vmem [#allocation10], %s1512
          %1514 = dma.done %s1510, 1024
        $region72: #{tpu_custom_call.1} parent=67 // pred_fallthru
          _
      $region68: #{tpu_custom_call.1} parent=5 // pred_fallthru
        _
    $region6: #{tpu_custom_call.1} parent=1 // loop_footer
      %s24 = sadd.s32 1, %s20
    $region7: #{tpu_custom_call.1} parent=1 // loop_footer_branch
      %19 = sbr.rel target = $region3
    $region8: #{tpu_custom_call.1} parent=1 // loop_exit
      _
    %1515 = vsyncpa [#allocation3], 1
    %s1516 = scalar_lea.sflag [#allocation3], 1
    %1517 = vsyncpa %s1516, 1
    %1518 = vsyncpa [#allocation6], 1
    %1519 = vsyncpa [#allocation9], 1
    %1520 = vsyncpa [#allocation4], 1
    %s1521 = scalar_lea.sflag [#allocation4], 1
    %1522 = vsyncpa %s1521, 1

</llo_original>
